<compile_context>
chip_gen: v6e
topology: v6e:2x2x1
jax: 0.10.0
libtpu: 0.0.40
codegen_flags: <defaults>
</compile_context>

<pallas_src>
import jax
import jax.numpy as jnp
from jax.experimental import pallas as pl
from jax.experimental.pallas import tpu as pltpu

# ---------------- configuration (small synthetic sizes) ----------------
E_CHAR = 50            # char embedding size (fixed by the module)
EMBED_SIZE = 32        # word embedding size
KERNEL = 5             # conv kernel width (fixed by the module)
VOCAB_CHARS = 96       # char vocab size
PAD_IDX = 0            # vocab.char2id['<pad>']

SENT_LEN = 8
BATCH = 2
MAX_WORD_LEN = 12      # L ; conv output length = L - KERNEL + 1

# padded (lane-aligned) sizes used inside the kernel
V_PAD = 128            # vocab 96  -> 128 (one-hot lane width / folded-weight rows)
E_PAD = 128            # embed 32  -> 128 (lane width of conv/highway intermediates)

MAX_TILE_WORDS = 512   # words processed per grid step


def _round_up(n, m):
    return ((n + m - 1) // m) * m


# ------------------------------ kernel ---------------------------------
def _word_cnn_kernel(ids_ref, wfold_ref, bconv_ref, whw_ref, bhw_ref, o_ref):
    """One tile of words: (one-hot @ folded conv) + relu/max + highway.

    ids_ref  : (TILE, L)               int32 char ids
    wfold_ref: (KERNEL, V_PAD, E_PAD)  bf16  folded (char-emb @ conv-tap) weights
    bconv_ref: (1, E_PAD)              f32   conv bias (padded cols = 0)
    whw_ref  : (E_PAD, 2*E_PAD)        f32   fused highway weight [proj | gate]
    bhw_ref  : (1, 2*E_PAD)            f32   fused highway bias   [proj | gate]
    o_ref    : (TILE, EMBED_SIZE)      f32   word embeddings
    """
    tile, L = ids_ref.shape
    v_pad = wfold_ref.shape[1]
    e_pad = whw_ref.shape[0]
    l_out = L - KERNEL + 1

    # ---- one-hot of char ids: direct bool -> bf16 cast (no f32 select) ----
    ids = ids_ref[...]                                              # (TILE, L)
    iota_v = jax.lax.broadcasted_iota(jnp.int32, (tile, L, v_pad), 2)
    onehot = (iota_v == ids[:, :, None]).astype(jnp.bfloat16)       # (TILE, L, V_PAD)

    # ---- Conv1d with the embedding table folded into the tap weights ----
    # acc[n,t,e] = sum_k Wfold[k][ids[n,t+k], e]  (exact row gather, f32 acc)
    acc = jnp.einsum('nlv,ve->nle', onehot[:, :l_out, :], wfold_ref[0],
                     preferred_element_type=jnp.float32)            # (TILE, L_out, E_PAD)
    for k in range(1, KERNEL):
        acc = acc + jnp.einsum('nlv,ve->nle', onehot[:, k:k + l_out, :],
                               wfold_ref[k],
                               preferred_element_type=jnp.float32)

    # ---- max-over-time, then bias + ReLU (bit-exact: bias const over time,
    #      relu/+bias are monotone) ----
    h = jnp.maximum(jnp.max(acc, axis=1) + bconv_ref[...], 0.0)     # (TILE, E_PAD)

    # ---- Highway: fused proj|gate matmul, then elementwise combine ----
    hw = jnp.dot(h, whw_ref[...], preferred_element_type=jnp.float32) + bhw_ref[...]
    proj = jnp.maximum(hw[:, :e_pad], 0.0)
    gate = jax.nn.sigmoid(hw[:, e_pad:])
    out = gate * proj + (1.0 - gate) * h

    # Dropout(p=0.3) is eval-mode identity.
    # TODO(synk): training-mode dropout would need pltpu.prng_seed/prng_random_bits.
    o_ref[...] = out[:, :o_ref.shape[-1]].astype(o_ref.dtype)


# ------------------------------ wrapper --------------------------------
def model_embeddings_forward(char_ids, prepared, *, max_tile_words=MAX_TILE_WORDS):
    """char_ids: int32 (sentence_len, batch, max_word_len) -> (sent, batch, EMBED)."""
    sent_len, batch, L = char_ids.shape
    assert L >= KERNEL
    n_words = sent_len * batch
    flat_ids = char_ids.reshape(n_words, L).astype(jnp.int32)

    # At least 2 grid steps when possible so both v7x TensorCores get work;
    # cap at MAX_TILE_WORDS words per step.  tile stays a multiple of 8.
    tile = min(max_tile_words, _round_up(pl.cdiv(n_words, 2), 8))
    n_pad = _round_up(n_words, tile)
    if n_pad != n_words:
        flat_ids = jnp.pad(flat_ids, ((0, n_pad - n_words), (0, 0)),
                           constant_values=PAD_IDX)

    grid = (n_pad // tile,)
    full2 = lambda i: (0, 0)

    out = pl.pallas_call(
        _word_cnn_kernel,
        out_shape=jax.ShapeDtypeStruct((n_pad, EMBED_SIZE), jnp.float32),
        grid_spec=pltpu.PrefetchScalarGridSpec(
            num_scalar_prefetch=0,
            grid=grid,
            in_specs=[
                pl.BlockSpec((tile, L), lambda i: (i, 0)),               # char ids
                pl.BlockSpec((KERNEL, V_PAD, E_PAD), lambda i: (0, 0, 0)),  # folded conv
                pl.BlockSpec((1, E_PAD), full2),                         # conv bias
                pl.BlockSpec((E_PAD, 2 * E_PAD), full2),                 # highway weight
                pl.BlockSpec((1, 2 * E_PAD), full2),                     # highway bias
            ],
            out_specs=pl.BlockSpec((tile, EMBED_SIZE), lambda i: (i, 0)),
        ),
        compiler_params=pltpu.CompilerParams(
            dimension_semantics=("parallel",),
            vmem_limit_bytes=32 * 1024 * 1024),
    )(flat_ids, prepared['wfold'], prepared['bconv'], prepared['whw'],
      prepared['bhw'])

    return out[:n_words].reshape(sent_len, batch, EMBED_SIZE)


# -------------------------- parameter handling -------------------------
def init_params(key):
    """PyTorch-layout parameters (Embedding / Conv1d / two Linear layers)."""
    ks = jax.random.split(key, 5)
    char_emb = 0.1 * jax.random.normal(ks[0], (VOCAB_CHARS, E_CHAR), jnp.float32)
    char_emb = char_emb.at[PAD_IDX].set(0.0)                          # padding_idx row = 0
    conv_w = 0.1 * jax.random.normal(ks[1], (EMBED_SIZE, E_CHAR, KERNEL), jnp.float32)
    conv_b = 0.1 * jax.random.normal(ks[2], (EMBED_SIZE,), jnp.float32)
    proj_w = 0.1 * jax.random.normal(ks[3], (EMBED_SIZE, EMBED_SIZE), jnp.float32)  # (out,in)
    proj_b = jnp.zeros((EMBED_SIZE,), jnp.float32)
    gate_w = 0.1 * jax.random.normal(ks[4], (EMBED_SIZE, EMBED_SIZE), jnp.float32)  # (out,in)
    gate_b = jnp.zeros((EMBED_SIZE,), jnp.float32)
    return dict(char_emb=char_emb, conv_w=conv_w, conv_b=conv_b,
                proj_w=proj_w, proj_b=proj_b, gate_w=gate_w, gate_b=gate_b)


def prepare_params(p):
    """Fold / pad / fuse / cast the PyTorch-layout params for the kernel."""
    # Fold the char-embedding table into each conv tap:
    #   Wfold[k][v, e] = sum_c char_emb[v, c] * conv_w[e, c, k]
    # so that  onehot(ids) @ Wfold[k]  ==  char-emb gather followed by conv tap k.
    wfold = jnp.zeros((KERNEL, V_PAD, E_PAD), jnp.float32)
    for k in range(KERNEL):
        tap = p['char_emb'] @ p['conv_w'][:, :, k].T                  # (VOCAB, EMBED)
        wfold = wfold.at[k, :VOCAB_CHARS, :EMBED_SIZE].set(tap)
    wfold = wfold.astype(jnp.bfloat16)                                # MXU-native operand

    bconv = jnp.zeros((1, E_PAD), jnp.float32).at[:, :EMBED_SIZE].set(
        p['conv_b'].reshape(1, -1))

    # Fused highway weight/bias: columns [0, E_PAD) = proj, [E_PAD, 2*E_PAD) = gate.
    whw = jnp.zeros((E_PAD, 2 * E_PAD), jnp.float32)
    whw = whw.at[:EMBED_SIZE, :EMBED_SIZE].set(p['proj_w'].T)
    whw = whw.at[:EMBED_SIZE, E_PAD:E_PAD + EMBED_SIZE].set(p['gate_w'].T)

    bhw = jnp.zeros((1, 2 * E_PAD), jnp.float32)
    bhw = bhw.at[:, :EMBED_SIZE].set(p['proj_b'].reshape(1, -1))
    bhw = bhw.at[:, E_PAD:E_PAD + EMBED_SIZE].set(p['gate_b'].reshape(1, -1))

    return dict(wfold=wfold, bconv=bconv, whw=whw, bhw=bhw)


# ------------------------------ reference ------------------------------
def _reference_forward(char_ids, params):
    """Pure-JAX f32 reference with PyTorch semantics."""
    sent_len, batch, L = char_ids.shape
    ids = char_ids.reshape(-1, L)
    x = jnp.take(params['char_emb'], ids, axis=0)                     # (N, L, C)
    l_out = L - KERNEL + 1
    conv = jnp.zeros((ids.shape[0], l_out, EMBED_SIZE), jnp.float32)
    for k in range(KERNEL):
        conv = conv + jnp.einsum('nlc,ec->nle', x[:, k:k + l_out, :],
                                 params['conv_w'][:, :, k])
    conv = conv + params['conv_b'][None, None, :]
    h = jnp.max(jax.nn.relu(conv), axis=1)                            # (N, E)

    proj = jax.nn.relu(h @ params['proj_w'].T + params['proj_b'])
    gate = jax.nn.sigmoid(h @ params['gate_w'].T + params['gate_b'])
    out = gate * proj + (1.0 - gate) * h
    return out.reshape(sent_len, batch, EMBED_SIZE)


# -------------------------------- main ---------------------------------
if __name__ == "__main__":
    key = jax.random.PRNGKey(0)
    k_param, k_ids = jax.random.split(key)

    params = init_params(k_param)
    prepared = prepare_params(params)
    char_ids = jax.random.randint(
        k_ids, (SENT_LEN, BATCH, MAX_WORD_LEN), 0, VOCAB_CHARS, dtype=jnp.int32)

    forward = jax.jit(model_embeddings_forward)
    out = forward(char_ids, prepared)
    out = jax.block_until_ready(out)

    ref = _reference_forward(char_ids, params)
    assert out.shape == (SENT_LEN, BATCH, EMBED_SIZE)
    max_diff = float(jnp.max(jnp.abs(out - ref)))
    # Tolerance covers bf16 rounding of the folded conv weights and default MXU
    # precision in the small f32 highway matmul (observed error ~1e-3).
    assert jnp.allclose(out, ref, atol=1e-2, rtol=1e-2), f"max abs diff {max_diff}"

    print("KERNEL_OK")
</pallas_src>

<mosaic_0001>
module attributes {stable_mosaic.version = 11 : i64} {
  func.func @_word_cnn_kernel(%arg0: i32, %arg1: memref<8x12xi32, #tpu.memory_space<vmem>>, %arg2: memref<5x128x128xbf16, #tpu.memory_space<vmem>>, %arg3: memref<1x128xf32, #tpu.memory_space<vmem>>, %arg4: memref<128x256xf32, #tpu.memory_space<vmem>>, %arg5: memref<1x256xf32, #tpu.memory_space<vmem>>, %arg6: memref<8x32xf32, #tpu.memory_space<vmem>>) attributes {dimension_semantics = [#tpu.dimension_semantics<parallel>], iteration_bounds = array<i64: 2>, scalar_prefetch = 0 : i64, scratch_operands = 0 : i64, tpu.core_type = #tpu.core_type<tc>, window_params = [{transform_indices = @transform_0, window_bounds = array<i64: 8, 12>}, {pipeline_mode = #tpu.pipeline_mode<synchronous>, transform_indices = @transform_1, window_bounds = array<i64: 5, 128, 128>}, {pipeline_mode = #tpu.pipeline_mode<synchronous>, transform_indices = @transform_2, window_bounds = array<i64: 1, 128>}, {pipeline_mode = #tpu.pipeline_mode<synchronous>, transform_indices = @transform_3, window_bounds = array<i64: 128, 256>}, {pipeline_mode = #tpu.pipeline_mode<synchronous>, transform_indices = @transform_4, window_bounds = array<i64: 1, 256>}, {transform_indices = @transform_5, window_bounds = array<i64: 8, 32>}]} {
    %c0 = arith.constant 0 : index
    %c0_0 = arith.constant 0 : index
    %0 = vector.load %arg1[%c0, %c0_0] : memref<8x12xi32, #tpu.memory_space<vmem>>, vector<8x12xi32>
    %1 = tpu.iota {dimensions = array<i32: 2>} : vector<8x12x128xi32>
    %2 = vector.shape_cast %0 : vector<8x12xi32> to vector<8x12x1xi32>
    %3 = vector.broadcast %2 : vector<8x12x1xi32> to vector<8x12x128xi32>
    %4 = arith.cmpi eq, %1, %3 : vector<8x12x128xi32>
    %5 = arith.extui %4 : vector<8x12x128xi1> to vector<8x12x128xi32>
    %6 = arith.sitofp %5 : vector<8x12x128xi32> to vector<8x12x128xf32>
    %7 = arith.truncf %6 : vector<8x12x128xf32> to vector<8x12x128xbf16>
    %8 = vector.extract_strided_slice %7 {offsets = [0, 0, 0], sizes = [8, 8, 128], strides = [1, 1, 1]} : vector<8x12x128xbf16> to vector<8x8x128xbf16>
    %c0_1 = arith.constant 0 : index
    %c0_2 = arith.constant 0 : index
    %c0_3 = arith.constant 0 : index
    %9 = vector.load %arg2[%c0_1, %c0_2, %c0_3] : memref<5x128x128xbf16, #tpu.memory_space<vmem>>, vector<1x128x128xbf16>
    %10 = vector.shape_cast %9 : vector<1x128x128xbf16> to vector<128x128xbf16>
    "tpu.trace_start"() <{level = 10 : i32, message = "nlv,ve->nle"}> : () -> ()
    %cst = arith.constant dense<0.000000e+00> : vector<8x8x128xf32>
    %11 = tpu.matmul %8, %10, %cst {dimension_numbers = #tpu.dot_dimension_numbers<[2], [0], [0, 1], [1], [0, 0, 0, 1, 1, 1], [], []>} : vector<8x8x128xbf16>, vector<128x128xbf16>, vector<8x8x128xf32> -> vector<8x8x128xf32>
    "tpu.trace_stop"() : () -> ()
    %12 = vector.extract_strided_slice %7 {offsets = [0, 1, 0], sizes = [8, 8, 128], strides = [1, 1, 1]} : vector<8x12x128xbf16> to vector<8x8x128xbf16>
    %c1 = arith.constant 1 : index
    %c0_4 = arith.constant 0 : index
    %c0_5 = arith.constant 0 : index
    %13 = vector.load %arg2[%c1, %c0_4, %c0_5] : memref<5x128x128xbf16, #tpu.memory_space<vmem>>, vector<1x128x128xbf16>
    %14 = vector.shape_cast %13 : vector<1x128x128xbf16> to vector<128x128xbf16>
    "tpu.trace_start"() <{level = 10 : i32, message = "nlv,ve->nle"}> : () -> ()
    %cst_6 = arith.constant dense<0.000000e+00> : vector<8x8x128xf32>
    %15 = tpu.matmul %12, %14, %cst_6 {dimension_numbers = #tpu.dot_dimension_numbers<[2], [0], [0, 1], [1], [0, 0, 0, 1, 1, 1], [], []>} : vector<8x8x128xbf16>, vector<128x128xbf16>, vector<8x8x128xf32> -> vector<8x8x128xf32>
    "tpu.trace_stop"() : () -> ()
    %16 = arith.addf %11, %15 : vector<8x8x128xf32>
    %17 = vector.extract_strided_slice %7 {offsets = [0, 2, 0], sizes = [8, 8, 128], strides = [1, 1, 1]} : vector<8x12x128xbf16> to vector<8x8x128xbf16>
    %c2 = arith.constant 2 : index
    %c0_7 = arith.constant 0 : index
    %c0_8 = arith.constant 0 : index
    %18 = vector.load %arg2[%c2, %c0_7, %c0_8] : memref<5x128x128xbf16, #tpu.memory_space<vmem>>, vector<1x128x128xbf16>
    %19 = vector.shape_cast %18 : vector<1x128x128xbf16> to vector<128x128xbf16>
    "tpu.trace_start"() <{level = 10 : i32, message = "nlv,ve->nle"}> : () -> ()
    %cst_9 = arith.constant dense<0.000000e+00> : vector<8x8x128xf32>
    %20 = tpu.matmul %17, %19, %cst_9 {dimension_numbers = #tpu.dot_dimension_numbers<[2], [0], [0, 1], [1], [0, 0, 0, 1, 1, 1], [], []>} : vector<8x8x128xbf16>, vector<128x128xbf16>, vector<8x8x128xf32> -> vector<8x8x128xf32>
    "tpu.trace_stop"() : () -> ()
    %21 = arith.addf %16, %20 : vector<8x8x128xf32>
    %22 = vector.extract_strided_slice %7 {offsets = [0, 3, 0], sizes = [8, 8, 128], strides = [1, 1, 1]} : vector<8x12x128xbf16> to vector<8x8x128xbf16>
    %c3 = arith.constant 3 : index
    %c0_10 = arith.constant 0 : index
    %c0_11 = arith.constant 0 : index
    %23 = vector.load %arg2[%c3, %c0_10, %c0_11] : memref<5x128x128xbf16, #tpu.memory_space<vmem>>, vector<1x128x128xbf16>
    %24 = vector.shape_cast %23 : vector<1x128x128xbf16> to vector<128x128xbf16>
    "tpu.trace_start"() <{level = 10 : i32, message = "nlv,ve->nle"}> : () -> ()
    %cst_12 = arith.constant dense<0.000000e+00> : vector<8x8x128xf32>
    %25 = tpu.matmul %22, %24, %cst_12 {dimension_numbers = #tpu.dot_dimension_numbers<[2], [0], [0, 1], [1], [0, 0, 0, 1, 1, 1], [], []>} : vector<8x8x128xbf16>, vector<128x128xbf16>, vector<8x8x128xf32> -> vector<8x8x128xf32>
    "tpu.trace_stop"() : () -> ()
    %26 = arith.addf %21, %25 : vector<8x8x128xf32>
    %27 = vector.extract_strided_slice %7 {offsets = [0, 4, 0], sizes = [8, 8, 128], strides = [1, 1, 1]} : vector<8x12x128xbf16> to vector<8x8x128xbf16>
    %c4 = arith.constant 4 : index
    %c0_13 = arith.constant 0 : index
    %c0_14 = arith.constant 0 : index
    %28 = vector.load %arg2[%c4, %c0_13, %c0_14] : memref<5x128x128xbf16, #tpu.memory_space<vmem>>, vector<1x128x128xbf16>
    %29 = vector.shape_cast %28 : vector<1x128x128xbf16> to vector<128x128xbf16>
    "tpu.trace_start"() <{level = 10 : i32, message = "nlv,ve->nle"}> : () -> ()
    %cst_15 = arith.constant dense<0.000000e+00> : vector<8x8x128xf32>
    %30 = tpu.matmul %27, %29, %cst_15 {dimension_numbers = #tpu.dot_dimension_numbers<[2], [0], [0, 1], [1], [0, 0, 0, 1, 1, 1], [], []>} : vector<8x8x128xbf16>, vector<128x128xbf16>, vector<8x8x128xf32> -> vector<8x8x128xf32>
    "tpu.trace_stop"() : () -> ()
    %31 = arith.addf %26, %30 : vector<8x8x128xf32>
    %cst_16 = arith.constant dense<0xFF800000> : vector<8x128xf32>
    %32 = vector.multi_reduction <maximumf>, %31, %cst_16 [1] : vector<8x8x128xf32> to vector<8x128xf32>
    %c0_17 = arith.constant 0 : index
    %c0_18 = arith.constant 0 : index
    %33 = vector.load %arg3[%c0_17, %c0_18] : memref<1x128xf32, #tpu.memory_space<vmem>>, vector<1x128xf32>
    %34 = vector.broadcast %33 : vector<1x128xf32> to vector<8x128xf32>
    %35 = arith.addf %32, %34 : vector<8x128xf32>
    %cst_19 = arith.constant 0.000000e+00 : f32
    %36 = vector.broadcast %cst_19 : f32 to vector<8x128xf32>
    %37 = arith.maximumf %35, %36 : vector<8x128xf32>
    %c0_20 = arith.constant 0 : index
    %c0_21 = arith.constant 0 : index
    %38 = vector.load %arg4[%c0_20, %c0_21] : memref<128x256xf32, #tpu.memory_space<vmem>>, vector<128x256xf32>
    %cst_22 = arith.constant dense<0.000000e+00> : vector<8x256xf32>
    %39 = tpu.matmul %37, %38, %cst_22 {dimension_numbers = #tpu.dot_dimension_numbers<[1], [0], [0], [1], [0, 0, 1, 1], [], []>} : vector<8x128xf32>, vector<128x256xf32>, vector<8x256xf32> -> vector<8x256xf32>
    %c0_23 = arith.constant 0 : index
    %c0_24 = arith.constant 0 : index
    %40 = vector.load %arg5[%c0_23, %c0_24] : memref<1x256xf32, #tpu.memory_space<vmem>>, vector<1x256xf32>
    %41 = vector.broadcast %40 : vector<1x256xf32> to vector<8x256xf32>
    %42 = arith.addf %39, %41 : vector<8x256xf32>
    %43 = vector.extract_strided_slice %42 {offsets = [0, 0], sizes = [8, 128], strides = [1, 1]} : vector<8x256xf32> to vector<8x128xf32>
    %cst_25 = arith.constant 0.000000e+00 : f32
    %44 = vector.broadcast %cst_25 : f32 to vector<8x128xf32>
    %45 = arith.maximumf %43, %44 : vector<8x128xf32>
    %46 = vector.extract_strided_slice %42 {offsets = [0, 128], sizes = [8, 128], strides = [1, 1]} : vector<8x256xf32> to vector<8x128xf32>
    %47 = arith.negf %46 : vector<8x128xf32>
    %48 = math.exp %47 : vector<8x128xf32>
    %cst_26 = arith.constant 1.000000e+00 : f32
    %49 = vector.broadcast %cst_26 : f32 to vector<8x128xf32>
    %50 = arith.addf %49, %48 : vector<8x128xf32>
    %51 = arith.divf %49, %50 : vector<8x128xf32>
    %52 = arith.mulf %51, %45 : vector<8x128xf32>
    %cst_27 = arith.constant 1.000000e+00 : f32
    %53 = vector.broadcast %cst_27 : f32 to vector<8x128xf32>
    %54 = arith.subf %53, %51 : vector<8x128xf32>
    %55 = arith.mulf %54, %37 : vector<8x128xf32>
    %56 = arith.addf %52, %55 : vector<8x128xf32>
    %57 = vector.extract_strided_slice %56 {offsets = [0, 0], sizes = [8, 32], strides = [1, 1]} : vector<8x128xf32> to vector<8x32xf32>
    %c0_28 = arith.constant 0 : index
    %c0_29 = arith.constant 0 : index
    %58 = vector.load %arg6[%c0_28, %c0_29] : memref<8x32xf32, #tpu.memory_space<vmem>>, vector<8x32xf32>
    tpu.vector_store %arg6[%c0_28, %c0_29], %57 {strides = array<i32>} : memref<8x32xf32, #tpu.memory_space<vmem>>, vector<8x32xf32>,
    return
  }
  func.func @transform_0(%arg0: i32) -> (i32, i32) {
    %c0_i32 = arith.constant 0 : i32
    %c0_i32_0 = arith.constant 0 : i32
    return %arg0, %c0_i32 : i32, i32
  }
  func.func @transform_1(%arg0: i32) -> (i32, i32, i32) {
    %c0_i32 = arith.constant 0 : i32
    %c0_i32_0 = arith.constant 0 : i32
    %c0_i32_1 = arith.constant 0 : i32
    %c0_i32_2 = arith.constant 0 : i32
    return %c0_i32, %c0_i32_0, %c0_i32_1 : i32, i32, i32
  }
  func.func @transform_2(%arg0: i32) -> (i32, i32) {
    %c0_i32 = arith.constant 0 : i32
    %c0_i32_0 = arith.constant 0 : i32
    %c0_i32_1 = arith.constant 0 : i32
    return %c0_i32, %c0_i32_0 : i32, i32
  }
  func.func @transform_3(%arg0: i32) -> (i32, i32) {
    %c0_i32 = arith.constant 0 : i32
    %c0_i32_0 = arith.constant 0 : i32
    %c0_i32_1 = arith.constant 0 : i32
    return %c0_i32, %c0_i32_0 : i32, i32
  }
  func.func @transform_4(%arg0: i32) -> (i32, i32) {
    %c0_i32 = arith.constant 0 : i32
    %c0_i32_0 = arith.constant 0 : i32
    %c0_i32_1 = arith.constant 0 : i32
    return %c0_i32, %c0_i32_0 : i32, i32
  }
  func.func @transform_5(%arg0: i32) -> (i32, i32) {
    %c0_i32 = arith.constant 0 : i32
    %c0_i32_0 = arith.constant 0 : i32
    return %arg0, %c0_i32 : i32, i32
  }
}

</mosaic_0001>

<llo_original>
// kernel: model_embeddings_forward.1
$region0: #{model_embeddings_forward.1}
  #allocation0 [shape = 'u32[]', space=smem, size = 0x4, offset = 0x4, fixed_abs, tag = 'smem constant byte address 0x4 - core index']
  #allocation1 [shape = 'u32[144,128]{1,0:T(1,128)}', space=vmem, size = 0x12000, scoped, tag = 'internal scratch']
  %s0 = inlined_call_operand.hbm [shape: s32[16,12], index: 0, kind: input, shape index: {}]
  %s1 = inlined_call_operand.hbm [shape: bf16[5,128,128], index: 1, kind: input, shape index: {}]
  %s2 = inlined_call_operand.vmem [shape: f32[1,128], index: 2, kind: input, shape index: {}]
  %s3 = inlined_call_operand.hbm [shape: f32[128,256], index: 3, kind: input, shape index: {}]
  %s4 = inlined_call_operand.vmem [shape: f32[1,256], index: 4, kind: input, shape index: {}]
  %s5 = inlined_call_operand.hbm [shape: f32[16,32], index: 5, kind: output, shape index: {}]
  %s6 = sld [smem:[#allocation0]]
  $region65: #{model_embeddings_forward.1} parent=0
    _
  %s8 = ssub.s32 1, %s6
  %s9 = scalar_select 0, %s8, %s6
  $region1: #{model_embeddings_forward.1} parent=0
    #allocation2 [shape = 'u8[8192]{0}', space=vmem, size = 0x2000, scoped, tag = 'input window, operand 0']
    #allocation3 [shape = 's32[2]{0}', space=sflag, size = 0x8, scoped, tag = 'scoped memory for model_embeddings_forward.1']
    #allocation4 [shape = 's32[2]{0}', space=sflag, size = 0x8, scoped, tag = 'scoped memory for model_embeddings_forward.1']
    #allocation5 [shape = 'u8[163840]{0}', space=vmem, size = 0x28000, scoped, tag = 'input window, operand 1, single buffered']
    #allocation6 [shape = 's32[1]{0}', space=sflag, size = 0x4, scoped, tag = 'scoped memory for model_embeddings_forward.1']
    #allocation7 [shape = 'u8[131072]{0}', space=vmem, size = 0x20000, scoped, tag = 'input window, operand 3, single buffered']
    #allocation8 [shape = 'u8[8192]{0}', space=vmem, size = 0x2000, scoped, tag = 'output window, operand 0']
    %10 = vsyncpa [#allocation3], 0
    %s11 = scalar_lea.sflag [#allocation3], 1
    %12 = vsyncpa %s11, 0
    %13 = vsyncpa [#allocation6], 0
    %14 = vsyncpa [#allocation4], 0
    %s15 = scalar_lea.sflag [#allocation4], 1
    %16 = vsyncpa %s15, 0
    loop: start=0, step=1, limit=4
    $region2: #{model_embeddings_forward.1} parent=1 // loop_pre_header
      _
    $region3: #{model_embeddings_forward.1} parent=1 // loop_header
      %s18 = sphi 0, %s22
      %p19 = scmp.ge.s32.totalorder %s18, 4
      %s28 = sphi 0, %s30
      %s31 = sphi 0, %s28
      %s32 = sphi 0, %s31
      %s48 = sphi 0, %s32
      %s52 = sphi 0, %s52
      %s54 = sphi 0, %s52
      %s55 = sphi 0, %s54
      %s69 = sphi 0, %s55
      %s73 = sphi 0, %s73
      %s75 = sphi 0, %s73
      %s76 = sphi 0, %s75
      %s90 = sphi 0, %s76
      %s94 = sphi 0, %s94
      %s96 = sphi 0, %s94
      %s97 = sphi 0, %s96
      %s111 = sphi 0, %s97
      %s115 = sphi 0, %s115
      %s117 = sphi 0, %s115
      %s118 = sphi 0, %s117
      %s132 = sphi 0, %s118
      %s138 = sphi 0, %s140
      %s141 = sphi 0, %s138
      %s142 = sphi 0, %s141
      %s158 = sphi 0, %s142
    $region4: #{model_embeddings_forward.1} parent=1 // loop_header_branch
      %21 = sbr.rel (%p19) target = $region8
    $region5: #{model_embeddings_forward.1} parent=1 // loop_body
      %s23 = ssub.s32 %s18, 1
      %s24 = ssub.s32 %s18, 2
      %s25 = sadd.s32 %s18, 1
      %s26 = ssub.s32 %s18, %s25
      %p27 = scmp.eq.s32.totalorder %s26, 0
      %s29 = sadd.s32 %s28, 1
      %s30 = scalar_select %p27, %s28, %s29
      %p33 = pneg %p27
      %p34 = scmp.eq.s32.totalorder %s18, 1
      %p35 = por %p33, %p34
      %p36 = scmp.ne.s32.totalorder %s28, %s31
      %p37 = scmp.eq.s32.totalorder %s18, 0
      %p38 = por %p36, %p37
      %p39 = scmp.ne.s32.totalorder %s28, %s31
      %p40 = scmp.eq.s32.totalorder %s23, 1
      %p41 = por %p39, %p40
      %p42 = scmp.ne.s32.totalorder %s31, %s32
      %p43 = scmp.eq.s32.totalorder %s23, 0
      %p44 = por %p42, %p43
      %p45 = scmp.ne.s32.totalorder %s31, %s32
      %p46 = scmp.eq.s32.totalorder %s24, 1
      %p47 = por %p45, %p46
      %p49 = scmp.ne.s32.totalorder %s32, %s48
      %p50 = scmp.eq.s32.totalorder %s24, 0
      %p51 = por %p49, %p50
      %s53 = sadd.s32 %s52, 1
      %p56 = scmp.eq.s32.totalorder %s18, 1
      %p57 = scmp.ne.s32.totalorder %s52, %s54
      %p58 = scmp.eq.s32.totalorder %s18, 0
      %p59 = por %p57, %p58
      %p60 = scmp.ne.s32.totalorder %s52, %s54
      %p61 = scmp.eq.s32.totalorder %s23, 1
      %p62 = por %p60, %p61
      %p63 = scmp.ne.s32.totalorder %s54, %s55
      %p64 = scmp.eq.s32.totalorder %s23, 0
      %p65 = por %p63, %p64
      %p66 = scmp.ne.s32.totalorder %s54, %s55
      %p67 = scmp.eq.s32.totalorder %s24, 1
      %p68 = por %p66, %p67
      %p70 = scmp.ne.s32.totalorder %s55, %s69
      %p71 = scmp.eq.s32.totalorder %s24, 0
      %p72 = por %p70, %p71
      %s74 = sadd.s32 %s73, 1
      %p77 = scmp.eq.s32.totalorder %s18, 1
      %p78 = scmp.ne.s32.totalorder %s73, %s75
      %p79 = scmp.eq.s32.totalorder %s18, 0
      %p80 = por %p78, %p79
      %p81 = scmp.ne.s32.totalorder %s73, %s75
      %p82 = scmp.eq.s32.totalorder %s23, 1
      %p83 = por %p81, %p82
      %p84 = scmp.ne.s32.totalorder %s75, %s76
      %p85 = scmp.eq.s32.totalorder %s23, 0
      %p86 = por %p84, %p85
      %p87 = scmp.ne.s32.totalorder %s75, %s76
      %p88 = scmp.eq.s32.totalorder %s24, 1
      %p89 = por %p87, %p88
      %p91 = scmp.ne.s32.totalorder %s76, %s90
      %p92 = scmp.eq.s32.totalorder %s24, 0
      %p93 = por %p91, %p92
      %s95 = sadd.s32 %s94, 1
      %p98 = scmp.eq.s32.totalorder %s18, 1
      %p99 = scmp.ne.s32.totalorder %s94, %s96
      %p100 = scmp.eq.s32.totalorder %s18, 0
      %p101 = por %p99, %p100
      %p102 = scmp.ne.s32.totalorder %s94, %s96
      %p103 = scmp.eq.s32.totalorder %s23, 1
      %p104 = por %p102, %p103
      %p105 = scmp.ne.s32.totalorder %s96, %s97
      %p106 = scmp.eq.s32.totalorder %s23, 0
      %p107 = por %p105, %p106
      %p108 = scmp.ne.s32.totalorder %s96, %s97
      %p109 = scmp.eq.s32.totalorder %s24, 1
      %p110 = por %p108, %p109
      %p112 = scmp.ne.s32.totalorder %s97, %s111
      %p113 = scmp.eq.s32.totalorder %s24, 0
      %p114 = por %p112, %p113
      %s116 = sadd.s32 %s115, 1
      %p119 = scmp.eq.s32.totalorder %s18, 1
      %p120 = scmp.ne.s32.totalorder %s115, %s117
      %p121 = scmp.eq.s32.totalorder %s18, 0
      %p122 = por %p120, %p121
      %p123 = scmp.ne.s32.totalorder %s115, %s117
      %p124 = scmp.eq.s32.totalorder %s23, 1
      %p125 = por %p123, %p124
      %p126 = scmp.ne.s32.totalorder %s117, %s118
      %p127 = scmp.eq.s32.totalorder %s23, 0
      %p128 = por %p126, %p127
      %p129 = scmp.ne.s32.totalorder %s117, %s118
      %p130 = scmp.eq.s32.totalorder %s24, 1
      %p131 = por %p129, %p130
      %p133 = scmp.ne.s32.totalorder %s118, %s132
      %p134 = scmp.eq.s32.totalorder %s24, 0
      %p135 = por %p133, %p134
      %s136 = ssub.s32 %s18, %s25
      %p137 = scmp.eq.s32.totalorder %s136, 0
      %s139 = sadd.s32 %s138, 1
      %s140 = scalar_select %p137, %s138, %s139
      %p143 = pneg %p137
      %p144 = scmp.eq.s32.totalorder %s18, 1
      %p145 = por %p143, %p144
      %p146 = scmp.ne.s32.totalorder %s138, %s141
      %p147 = scmp.eq.s32.totalorder %s18, 0
      %p148 = por %p146, %p147
      %p149 = scmp.ne.s32.totalorder %s138, %s141
      %p150 = scmp.eq.s32.totalorder %s23, 1
      %p151 = por %p149, %p150
      %p152 = scmp.ne.s32.totalorder %s141, %s142
      %p153 = scmp.eq.s32.totalorder %s23, 0
      %p154 = por %p152, %p153
      %p155 = scmp.ne.s32.totalorder %s141, %s142
      %p156 = scmp.eq.s32.totalorder %s24, 1
      %p157 = por %p155, %p156
      %p159 = scmp.ne.s32.totalorder %s142, %s158
      %p160 = scmp.eq.s32.totalorder %s24, 0
      %p161 = por %p159, %p160
      %p162 = scmp.le.s32.totalorder 1, %s18
      %p163 = scmp.lt.s32.totalorder %s18, 3
      %p164 = pnand %p162, %p163
      %p165 = pneg %p164
      // Predicated region
      $region9: #{model_embeddings_forward.1} parent=5 // pred_check
        _
      $region10: #{model_embeddings_forward.1} parent=5 // pred_check_branch
        %167 = sbr.rel (%p164) target = $region12
      $region11: #{model_embeddings_forward.1} parent=5 // pred_region
        %s168 = ssub.s32 %s18, 1
        // Predicated region
        $region13: #{model_embeddings_forward.1} parent=11 // pred_check
          %p169 = pneg %p65
        $region14: #{model_embeddings_forward.1} parent=11 // pred_check_branch
          %171 = sbr.rel (%p169) target = $region16
        $region15: #{model_embeddings_forward.1} parent=11 // pred_region
          %s173 = ssub.s32 5120, 5120
          %174 = vsyncadd [#allocation6], %s173
          %s175 = sshll.u32 [#allocation5], 4
          %s176 = int_to_ptr.vmem [resolvable:$true] %s175
          %181 = dma.hbm_to_vmem [thread:$0]  %s1, 5120, %s176, [#allocation6], 64, 64, 4
        $region16: #{model_embeddings_forward.1} parent=11 // pred_fallthru
          _
        // Predicated region
        $region17: #{model_embeddings_forward.1} parent=11 // pred_check
          %p182 = pneg %p86
        $region18: #{model_embeddings_forward.1} parent=11 // pred_check_branch
          %184 = sbr.rel (%p182) target = $region20
        $region19: #{model_embeddings_forward.1} parent=11 // pred_region
          _
        $region20: #{model_embeddings_forward.1} parent=11 // pred_fallthru
          _
        // Predicated region
        $region21: #{model_embeddings_forward.1} parent=11 // pred_check
          %p185 = pneg %p107
        $region22: #{model_embeddings_forward.1} parent=11 // pred_check_branch
          %187 = sbr.rel (%p185) target = $region24
        $region23: #{model_embeddings_forward.1} parent=11 // pred_region
          %s189 = ssub.s32 4096, 4096
          %190 = vsyncadd [#allocation6], %s189
          %s191 = sshll.u32 [#allocation7], 4
          %s192 = int_to_ptr.vmem [resolvable:$true] %s191
          %197 = dma.hbm_to_vmem [thread:$0]  %s3, 4096, %s192, [#allocation6], 256, 256, 16
        $region24: #{model_embeddings_forward.1} parent=11 // pred_fallthru
          _
        // Predicated region
        $region25: #{model_embeddings_forward.1} parent=11 // pred_check
          %p198 = pneg %p128
        $region26: #{model_embeddings_forward.1} parent=11 // pred_check_branch
          %200 = sbr.rel (%p198) target = $region28
        $region27: #{model_embeddings_forward.1} parent=11 // pred_region
          _
        $region28: #{model_embeddings_forward.1} parent=11 // pred_fallthru
          _
      $region12: #{model_embeddings_forward.1} parent=5 // pred_fallthru
        _
      %p201 = scmp.lt.s32.totalorder %s18, 2
      // Predicated region
      $region29: #{model_embeddings_forward.1} parent=5 // pred_check
        %p202 = pneg %p201
      $region30: #{model_embeddings_forward.1} parent=5 // pred_check_branch
        %204 = sbr.rel (%p202) target = $region32
      $region31: #{model_embeddings_forward.1} parent=5 // pred_region
        // Predicated region
        $region33: #{model_embeddings_forward.1} parent=31 // pred_check
          %p205 = pneg %p38
        $region34: #{model_embeddings_forward.1} parent=31 // pred_check_branch
          %207 = sbr.rel (%p205) target = $region36
        $region35: #{model_embeddings_forward.1} parent=31 // pred_region
          %s208 = sand.u32 %s28, 1
          %s209 = scalar_lea.sflag [#allocation3], %s208
          %s210 = sand.u32 %s28, 1
          %s211 = smul.addr %s210, 8
          %s212 = scalar_lea.vmem [#allocation2], %s211
          %s214 = ssub.s32 128, 128
          %215 = vsyncadd %s209, %s214
          %s216 = smul.addr %s18, 128
          %s217 = scalar_lea.hbm %s0, %s216
          %s219 = sshll.u32 %s212, 4
          %s220 = int_to_ptr.vmem [resolvable:$true] %s219
          %222 = dma.hbm_to_vmem [thread:$0]  %s217, 128, %s220, %s209
        $region36: #{model_embeddings_forward.1} parent=31 // pred_fallthru
          _
      $region32: #{model_embeddings_forward.1} parent=5 // pred_fallthru
        _
      %p223 = scmp.le.s32.totalorder 1, %s18
      %p224 = scmp.lt.s32.totalorder %s18, 3
      %p225 = pnand %p223, %p224
      %p226 = pneg %p225
      // Predicated region
      $region37: #{model_embeddings_forward.1} parent=5 // pred_check
        _
      $region38: #{model_embeddings_forward.1} parent=5 // pred_check_branch
        %228 = sbr.rel (%p225) target = $region40
      $region39: #{model_embeddings_forward.1} parent=5 // pred_region
        %s229 = ssub.s32 %s18, 1
        %s230 = sand.u32 %s31, 1
        %s231 = scalar_lea.sflag [#allocation3], %s230
        %s232 = sand.u32 %s31, 1
        %s233 = smul.addr %s232, 8
        %s234 = scalar_lea.vmem [#allocation2], %s233
        // Predicated region
        $region41: #{model_embeddings_forward.1} parent=39 // pred_check
          %p235 = pneg %p44
        $region42: #{model_embeddings_forward.1} parent=39 // pred_check_branch
          %237 = sbr.rel (%p235) target = $region44
        $region43: #{model_embeddings_forward.1} parent=39 // pred_region
          %238 = dma.done %s231, 128
        $region44: #{model_embeddings_forward.1} parent=39 // pred_fallthru
          _
        // Predicated region
        $region45: #{model_embeddings_forward.1} parent=39 // pred_check
          %p239 = pneg %p65
        $region46: #{model_embeddings_forward.1} parent=39 // pred_check_branch
          %241 = sbr.rel (%p239) target = $region48
        $region47: #{model_embeddings_forward.1} parent=39 // pred_region
          %242 = dma.done [#allocation6], 5120
        $region48: #{model_embeddings_forward.1} parent=39 // pred_fallthru
          _
        // Predicated region
        $region49: #{model_embeddings_forward.1} parent=39 // pred_check
          %p243 = pneg %p107
        $region50: #{model_embeddings_forward.1} parent=39 // pred_check_branch
          %245 = sbr.rel (%p243) target = $region52
        $region51: #{model_embeddings_forward.1} parent=39 // pred_region
          %246 = dma.done [#allocation6], 4096
        $region52: #{model_embeddings_forward.1} parent=39 // pred_fallthru
          _
        %s247 = sand.u32 %s31, 1
        %s248 = scalar_lea.sflag [#allocation3], %s247
        %s249 = sand.u32 %s31, 1
        %s250 = smul.addr %s249, 8
        %s251 = scalar_lea.vmem [#allocation2], %s250
        %p252 = pneg %p44
        %p253 = pneg %p41
        %p254 = pneg %p65
        %p255 = pneg %p62
        %p256 = pneg %p86
        %p257 = pneg %p83
        %p258 = pneg %p107
        %p259 = pneg %p104
        %p260 = pneg %p128
        %p261 = pneg %p125
        %p262 = pneg %p154
        %p263 = pneg %p151
        %s264 = sand.u32 %s141, 1
        %s265 = scalar_lea.sflag [#allocation4], %s264
        %s266 = sand.u32 %s141, 1
        %s267 = smul.addr %s266, 8
        %s268 = scalar_lea.vmem [#allocation8], %s267
        %v270 = vld [vmem:[%s234] sm:$0xff]
        %v271 = vlaneseq
        %v272 = vand.u32 %v271, 127
        %v273 = vlaneseq
        %v274 = vshrl.u32 %v273, 7
        %v275 = vsub.s32 0, %v274
        %v276 = vrot.slane %v270, %v275
        %278 = vbcast.lane.b32.xlu0 %v276, 256
        %v279 = vpop.permute.xlu0 %278
        %s281 = sor.u32 256, 8
        %282 = vbcast.lane.b32.xlu0 %v276, %s281
        %v283 = vpop.permute.xlu0 %282
        %v284 = vlaneseq
        %v285 = vshrl.u32 %v284, 7
        %v286 = vsub.s32 1, %v285
        %v287 = vrot.slane %v270, %v286
        %289 = vbcast.lane.b32.xlu0 %v287, 256
        %v290 = vpop.permute.xlu0 %289
        %s292 = sor.u32 256, 8
        %293 = vbcast.lane.b32.xlu0 %v287, %s292
        %v294 = vpop.permute.xlu0 %293
        %v295 = vlaneseq
        %v296 = vshrl.u32 %v295, 7
        %v297 = vsub.s32 2, %v296
        %v298 = vrot.slane %v270, %v297
        %300 = vbcast.lane.b32.xlu0 %v298, 256
        %v301 = vpop.permute.xlu0 %300
        %s303 = sor.u32 256, 8
        %304 = vbcast.lane.b32.xlu0 %v298, %s303
        %v305 = vpop.permute.xlu0 %304
        %v306 = vlaneseq
        %v307 = vshrl.u32 %v306, 7
        %v308 = vsub.s32 3, %v307
        %v309 = vrot.slane %v270, %v308
        %311 = vbcast.lane.b32.xlu0 %v309, 256
        %v312 = vpop.permute.xlu0 %311
        %s314 = sor.u32 256, 8
        %315 = vbcast.lane.b32.xlu0 %v309, %s314
        %v316 = vpop.permute.xlu0 %315
        %v317 = vlaneseq
        %v318 = vshrl.u32 %v317, 7
        %v319 = vsub.s32 4, %v318
        %v320 = vrot.slane %v270, %v319
        %322 = vbcast.lane.b32.xlu0 %v320, 256
        %v323 = vpop.permute.xlu0 %322
        %s325 = sor.u32 256, 8
        %326 = vbcast.lane.b32.xlu0 %v320, %s325
        %v327 = vpop.permute.xlu0 %326
        %v328 = vlaneseq
        %v329 = vshrl.u32 %v328, 7
        %v330 = vsub.s32 5, %v329
        %v331 = vrot.slane %v270, %v330
        %333 = vbcast.lane.b32.xlu0 %v331, 256
        %v334 = vpop.permute.xlu0 %333
        %s336 = sor.u32 256, 8
        %337 = vbcast.lane.b32.xlu0 %v331, %s336
        %v338 = vpop.permute.xlu0 %337
        %v339 = vlaneseq
        %v340 = vshrl.u32 %v339, 7
        %v341 = vsub.s32 6, %v340
        %v342 = vrot.slane %v270, %v341
        %344 = vbcast.lane.b32.xlu0 %v342, 256
        %v345 = vpop.permute.xlu0 %344
        %s347 = sor.u32 256, 8
        %348 = vbcast.lane.b32.xlu0 %v342, %s347
        %v349 = vpop.permute.xlu0 %348
        %v350 = vlaneseq
        %v351 = vshrl.u32 %v350, 7
        %v352 = vsub.s32 7, %v351
        %v353 = vrot.slane %v270, %v352
        %355 = vbcast.lane.b32.xlu0 %v353, 256
        %v356 = vpop.permute.xlu0 %355
        %s358 = sor.u32 256, 8
        %359 = vbcast.lane.b32.xlu0 %v353, %s358
        %v360 = vpop.permute.xlu0 %359
        %vm361 = vcmp.eq.s32.totalorder %v272, %v279
        %vm362 = vcmp.eq.s32.totalorder %v272, %v283
        %vm363 = vcmp.eq.s32.totalorder %v272, %v290
        %vm364 = vcmp.eq.s32.totalorder %v272, %v294
        %vm365 = vcmp.eq.s32.totalorder %v272, %v301
        %vm366 = vcmp.eq.s32.totalorder %v272, %v305
        %vm367 = vcmp.eq.s32.totalorder %v272, %v312
        %vm368 = vcmp.eq.s32.totalorder %v272, %v316
        %vm369 = vcmp.eq.s32.totalorder %v272, %v323
        %vm370 = vcmp.eq.s32.totalorder %v272, %v327
        %vm371 = vcmp.eq.s32.totalorder %v272, %v334
        %vm372 = vcmp.eq.s32.totalorder %v272, %v338
        %vm373 = vcmp.eq.s32.totalorder %v272, %v345
        %vm374 = vcmp.eq.s32.totalorder %v272, %v349
        %vm375 = vcmp.eq.s32.totalorder %v272, %v356
        %vm376 = vcmp.eq.s32.totalorder %v272, %v360
        %v377 = vsel %vm361, 1, 0
        %v378 = vsel %vm362, 1, 0
        %v379 = vsel %vm363, 1, 0
        %v380 = vsel %vm364, 1, 0
        %v381 = vsel %vm365, 1, 0
        %v382 = vsel %vm366, 1, 0
        %v383 = vsel %vm367, 1, 0
        %v384 = vsel %vm368, 1, 0
        %v385 = vsel %vm369, 1, 0
        %v386 = vsel %vm370, 1, 0
        %v387 = vsel %vm371, 1, 0
        %v388 = vsel %vm372, 1, 0
        %v389 = vsel %vm373, 1, 0
        %v390 = vsel %vm374, 1, 0
        %v391 = vsel %vm375, 1, 0
        %v392 = vsel %vm376, 1, 0
        %v393 = vcvt.s32.f32 %v377
        %v394 = vcvt.s32.f32 %v378
        %v395 = vcvt.s32.f32 %v379
        %v396 = vcvt.s32.f32 %v380
        %v397 = vcvt.s32.f32 %v381
        %v398 = vcvt.s32.f32 %v382
        %v399 = vcvt.s32.f32 %v383
        %v400 = vcvt.s32.f32 %v384
        %v401 = vcvt.s32.f32 %v385
        %v402 = vcvt.s32.f32 %v386
        %v403 = vcvt.s32.f32 %v387
        %v404 = vcvt.s32.f32 %v388
        %v405 = vcvt.s32.f32 %v389
        %v406 = vcvt.s32.f32 %v390
        %v407 = vcvt.s32.f32 %v391
        %v408 = vcvt.s32.f32 %v392
        %v409 = vpack.c.bf16 %v394, %v393
        %v410 = vpack.c.bf16 %v396, %v395
        %v411 = vpack.c.bf16 %v398, %v397
        %v412 = vpack.c.bf16 %v400, %v399
        %v413 = vpack.c.bf16 %v402, %v401
        %v414 = vpack.c.bf16 %v404, %v403
        %v415 = vpack.c.bf16 %v406, %v405
        %v416 = vpack.c.bf16 %v408, %v407
        %v417 = vld [vmem:[#allocation5] sm:$0xf]
        %v418 = vld [vmem:[#allocation5 + $0x4] sm:$0xf]
        %v419 = vld [vmem:[#allocation5 + $0x8] sm:$0xf]
        %v420 = vld [vmem:[#allocation5 + $0xc] sm:$0xf]
        %v421 = vld [vmem:[#allocation5 + $0x10] sm:$0xf]
        %v422 = vld [vmem:[#allocation5 + $0x14] sm:$0xf]
        %v423 = vld [vmem:[#allocation5 + $0x18] sm:$0xf]
        %v424 = vld [vmem:[#allocation5 + $0x1c] sm:$0xf]
        %v425 = vld [vmem:[#allocation5 + $0x20] sm:$0xf]
        %v426 = vld [vmem:[#allocation5 + $0x24] sm:$0xf]
        %v427 = vld [vmem:[#allocation5 + $0x28] sm:$0xf]
        %v428 = vld [vmem:[#allocation5 + $0x2c] sm:$0xf]
        %v429 = vld [vmem:[#allocation5 + $0x30] sm:$0xf]
        %v430 = vld [vmem:[#allocation5 + $0x34] sm:$0xf]
        %v431 = vld [vmem:[#allocation5 + $0x38] sm:$0xf]
        %v432 = vld [vmem:[#allocation5 + $0x3c] sm:$0xf]
        %s433 = scalar_lea.vmem [#allocation5], 64
        %v434 = vld [vmem:[%s433] sm:$0xf]
        %v435 = vld [vmem:[%s433 + $0x4] sm:$0xf]
        %v436 = vld [vmem:[%s433 + $0x8] sm:$0xf]
        %v437 = vld [vmem:[%s433 + $0xc] sm:$0xf]
        %v438 = vld [vmem:[%s433 + $0x10] sm:$0xf]
        %v439 = vld [vmem:[%s433 + $0x14] sm:$0xf]
        %v440 = vld [vmem:[%s433 + $0x18] sm:$0xf]
        %v441 = vld [vmem:[%s433 + $0x1c] sm:$0xf]
        %v442 = vld [vmem:[%s433 + $0x20] sm:$0xf]
        %v443 = vld [vmem:[%s433 + $0x24] sm:$0xf]
        %v444 = vld [vmem:[%s433 + $0x28] sm:$0xf]
        %v445 = vld [vmem:[%s433 + $0x2c] sm:$0xf]
        %v446 = vld [vmem:[%s433 + $0x30] sm:$0xf]
        %v447 = vld [vmem:[%s433 + $0x34] sm:$0xf]
        %v448 = vld [vmem:[%s433 + $0x38] sm:$0xf]
        %v449 = vld [vmem:[%s433 + $0x3c] sm:$0xf]
        %v458 = vunpack.c.l.b16 %v409
        %v459 = vunpack.c.h.b16 %v409
        %v460 = vunpack.c.l.b16 %v410
        %v461 = vunpack.c.h.b16 %v410
        %v462 = vunpack.c.l.b16 %v411
        %v463 = vunpack.c.h.b16 %v411
        %v464 = vunpack.c.l.b16 %v412
        %v465 = vunpack.c.h.b16 %v412
        %v466 = vunpack.c.l.b16 %v413
        %v467 = vunpack.c.h.b16 %v413
        %v468 = vunpack.c.l.b16 %v414
        %v469 = vunpack.c.h.b16 %v414
        %v470 = vunpack.c.l.b16 %v415
        %v471 = vunpack.c.h.b16 %v415
        %v472 = vunpack.c.l.b16 %v416
        %v473 = vunpack.c.h.b16 %v416
        %v474 = vpack.c.b16 %v458, %v458
        %v475 = vpack.c.b16 %v459, %v459
        %v476 = vpack.c.b16 %v460, %v460
        %v477 = vpack.c.b16 %v461, %v461
        %v478 = vpack.c.b16 %v462, %v462
        %v479 = vpack.c.b16 %v463, %v463
        %v480 = vpack.c.b16 %v464, %v464
        %v481 = vpack.c.b16 %v465, %v465
        %v482 = vpack.c.b16 %v466, %v466
        %v483 = vpack.c.b16 %v467, %v467
        %v484 = vpack.c.b16 %v468, %v468
        %v485 = vpack.c.b16 %v469, %v469
        %v486 = vpack.c.b16 %v470, %v470
        %v487 = vpack.c.b16 %v471, %v471
        %v488 = vpack.c.b16 %v472, %v472
        %v489 = vpack.c.b16 %v473, %v473
        %vm490 = vsmask.f32 3328
        %vm491 = vsmask.f32 7440
        %vm492 = vmor %vm490, %vm491
        %v494 = vshrl.u32 %v474, 16
        %v496 = vrot.slane %v494, 4
        %v497 = vshll.u32 %v474, 16
        %v499 = vrot.slane %v497, 5
        %v500 = vor.u32 %v496, %v499
        %v501 = vrot.slane %v500, 4
        %v503 = vshll.u32 %v475, 16
        %v505 = vrot.slane %v503, 5
        %v506 = vsel %vm492, %v501, %v505
        %v508 = vshrl.u32 %v476, 16
        %v510 = vrot.slane %v508, 4
        %v511 = vshll.u32 %v476, 16
        %v513 = vrot.slane %v511, 5
        %v514 = vor.u32 %v510, %v513
        %v515 = vrot.slane %v514, 4
        %v517 = vshll.u32 %v477, 16
        %v519 = vrot.slane %v517, 5
        %v520 = vsel %vm492, %v515, %v519
        %v522 = vshrl.u32 %v478, 16
        %v524 = vrot.slane %v522, 4
        %v525 = vshll.u32 %v478, 16
        %v527 = vrot.slane %v525, 5
        %v528 = vor.u32 %v524, %v527
        %v529 = vrot.slane %v528, 4
        %v531 = vshll.u32 %v479, 16
        %v533 = vrot.slane %v531, 5
        %v534 = vsel %vm492, %v529, %v533
        %v536 = vshrl.u32 %v480, 16
        %v538 = vrot.slane %v536, 4
        %v539 = vshll.u32 %v480, 16
        %v541 = vrot.slane %v539, 5
        %v542 = vor.u32 %v538, %v541
        %v543 = vrot.slane %v542, 4
        %v545 = vshll.u32 %v481, 16
        %v547 = vrot.slane %v545, 5
        %v548 = vsel %vm492, %v543, %v547
        %v550 = vshrl.u32 %v482, 16
        %v552 = vrot.slane %v550, 4
        %v553 = vshll.u32 %v482, 16
        %v555 = vrot.slane %v553, 5
        %v556 = vor.u32 %v552, %v555
        %v557 = vrot.slane %v556, 4
        %v559 = vshll.u32 %v483, 16
        %v561 = vrot.slane %v559, 5
        %v562 = vsel %vm492, %v557, %v561
        %v564 = vshrl.u32 %v484, 16
        %v566 = vrot.slane %v564, 4
        %v567 = vshll.u32 %v484, 16
        %v569 = vrot.slane %v567, 5
        %v570 = vor.u32 %v566, %v569
        %v571 = vrot.slane %v570, 4
        %v573 = vshll.u32 %v485, 16
        %v575 = vrot.slane %v573, 5
        %v576 = vsel %vm492, %v571, %v575
        %v578 = vshrl.u32 %v486, 16
        %v580 = vrot.slane %v578, 4
        %v581 = vshll.u32 %v486, 16
        %v583 = vrot.slane %v581, 5
        %v584 = vor.u32 %v580, %v583
        %v585 = vrot.slane %v584, 4
        %v587 = vshll.u32 %v487, 16
        %v589 = vrot.slane %v587, 5
        %v590 = vsel %vm492, %v585, %v589
        %v592 = vshrl.u32 %v488, 16
        %v594 = vrot.slane %v592, 4
        %v595 = vshll.u32 %v488, 16
        %v597 = vrot.slane %v595, 5
        %v598 = vor.u32 %v594, %v597
        %v599 = vrot.slane %v598, 4
        %v601 = vshll.u32 %v489, 16
        %v603 = vrot.slane %v601, 5
        %v604 = vsel %vm492, %v599, %v603
        %v605 = vunpack.c.l.b16 %v506
        %v606 = vunpack.c.l.b16 %v520
        %v607 = vunpack.c.l.b16 %v534
        %v608 = vunpack.c.l.b16 %v548
        %v609 = vunpack.c.l.b16 %v562
        %v610 = vunpack.c.l.b16 %v576
        %v611 = vunpack.c.l.b16 %v590
        %v612 = vunpack.c.l.b16 %v604
        %v613 = vpack.c.b16 %v606, %v605
        %v614 = vpack.c.b16 %v608, %v607
        %v615 = vpack.c.b16 %v610, %v609
        %v616 = vpack.c.b16 %v612, %v611
        %v637 = vunpack.c.l.b16 %v434
        %v638 = vunpack.c.l.b16 %v435
        %v639 = vunpack.c.l.b16 %v436
        %v640 = vunpack.c.l.b16 %v437
        %v641 = vunpack.c.l.b16 %v438
        %v642 = vunpack.c.l.b16 %v439
        %v643 = vunpack.c.l.b16 %v440
        %v644 = vunpack.c.l.b16 %v441
        %v645 = vunpack.c.l.b16 %v442
        %v646 = vunpack.c.l.b16 %v443
        %v647 = vunpack.c.l.b16 %v444
        %v648 = vunpack.c.l.b16 %v445
        %v649 = vunpack.c.l.b16 %v446
        %v650 = vunpack.c.l.b16 %v447
        %v651 = vunpack.c.l.b16 %v448
        %v652 = vunpack.c.l.b16 %v449
        %v653 = vpack.c.b16 %v638, %v637
        %v654 = vpack.c.b16 %v640, %v639
        %v655 = vpack.c.b16 %v642, %v641
        %v656 = vpack.c.b16 %v644, %v643
        %v657 = vpack.c.b16 %v646, %v645
        %v658 = vpack.c.b16 %v648, %v647
        %v659 = vpack.c.b16 %v650, %v649
        %v660 = vpack.c.b16 %v652, %v651
        %669 = vmatprep.subr.bf16.mxu0 0
        %670 = vmatpush1.bf16.msra.mxu0 %v660
        %671 = vmatprep.subr.bf16.mxu0 0
        %672 = vmatpush1.bf16.msra.mxu0 %v659
        %673 = vmatprep.subr.bf16.mxu0 0
        %674 = vmatpush1.bf16.msra.mxu0 %v658
        %675 = vmatprep.subr.bf16.mxu0 0
        %676 = vmatpush1.bf16.msra.mxu0 %v657
        %677 = vmatprep.subr.bf16.mxu0 0
        %678 = vmatpush1.bf16.msra.mxu0 %v656
        %679 = vmatprep.subr.bf16.mxu0 0
        %680 = vmatpush1.bf16.msra.mxu0 %v655
        %681 = vmatprep.subr.bf16.mxu0 0
        %682 = vmatpush1.bf16.msra.mxu0 %v654
        %683 = vmatprep.subr.bf16.mxu0 0
        %684 = vmatpush1.bf16.msra.mxu0 %v653
        %685 = vmatprep.subr.bf16.mxu0 0
        %686 = vmatpush2.bf16.msra.mxu0 0
        %687 = vmatprep.subr.bf16.mxu0 0
        %688 = vmatpush2.bf16.msra.mxu0 0
        %689 = vmatprep.subr.bf16.mxu0 0
        %690 = vmatpush2.bf16.msra.mxu0 0
        %691 = vmatprep.subr.bf16.mxu0 0
        %692 = vmatpush2.bf16.msra.mxu0 0
        %693 = vmatprep.subr.bf16.mxu0 0
        %694 = vmatpush2.bf16.msra.mxu0 0
        %695 = vmatprep.subr.bf16.mxu0 0
        %696 = vmatpush2.bf16.msra.mxu0 0
        %697 = vmatprep.subr.bf16.mxu0 0
        %698 = vmatpush2.bf16.msra.mxu0 0
        %699 = vmatprep.subr.bf16.mxu0 0
        %700 = vmatpush2.bf16.msra.mxu0 0
        %701 = vmatprep.mubr.bf16.mxu0 0
        %702 = vmatmul.mubr.bf16.gmra.mxu0 %v613
        %v703 = vpop.f32.mrf.mxu0
        %v704 = vadd.f32 0.0, %v703
        %v705 = vpop.f32.mrf.mxu0
        %v706 = vpop.f32.mrf.mxu0
        %v707 = vadd.f32 0.0, %v706
        %v708 = vpop.f32.mrf.mxu0
        %709 = vmatprep.mubr.bf16.mxu0 0
        %710 = vmatmul.mubr.bf16.gmra.mxu0 %v614
        %v711 = vpop.f32.mrf.mxu0
        %v712 = vadd.f32 0.0, %v711
        %v713 = vpop.f32.mrf.mxu0
        %v714 = vpop.f32.mrf.mxu0
        %v715 = vadd.f32 0.0, %v714
        %v716 = vpop.f32.mrf.mxu0
        %717 = vmatprep.mubr.bf16.mxu0 0
        %718 = vmatmul.mubr.bf16.gmra.mxu0 %v615
        %v719 = vpop.f32.mrf.mxu0
        %v720 = vadd.f32 0.0, %v719
        %v721 = vpop.f32.mrf.mxu0
        %v722 = vpop.f32.mrf.mxu0
        %v723 = vadd.f32 0.0, %v722
        %v724 = vpop.f32.mrf.mxu0
        %725 = vmatprep.mubr.bf16.mxu0 0
        %726 = vmatmul.mubr.bf16.gmra.mxu0 %v616
        %v727 = vpop.f32.mrf.mxu0
        %v728 = vadd.f32 0.0, %v727
        %v729 = vpop.f32.mrf.mxu0
        %v730 = vpop.f32.mrf.mxu0
        %v731 = vadd.f32 0.0, %v730
        %v732 = vpop.f32.mrf.mxu0
        %733 = vdwg.mxu0
        %v734 = vpack.c.b16 %v460, %v458
        %v735 = vpack.c.b16 %v464, %v462
        %v736 = vpack.c.b16 %v468, %v466
        %v737 = vpack.c.b16 %v472, %v470
        %v758 = vunpack.c.l.b16 %v417
        %v759 = vunpack.c.l.b16 %v418
        %v760 = vunpack.c.l.b16 %v419
        %v761 = vunpack.c.l.b16 %v420
        %v762 = vunpack.c.l.b16 %v421
        %v763 = vunpack.c.l.b16 %v422
        %v764 = vunpack.c.l.b16 %v423
        %v765 = vunpack.c.l.b16 %v424
        %v766 = vunpack.c.l.b16 %v425
        %v767 = vunpack.c.l.b16 %v426
        %v768 = vunpack.c.l.b16 %v427
        %v769 = vunpack.c.l.b16 %v428
        %v770 = vunpack.c.l.b16 %v429
        %v771 = vunpack.c.l.b16 %v430
        %v772 = vunpack.c.l.b16 %v431
        %v773 = vunpack.c.l.b16 %v432
        %v774 = vpack.c.b16 %v759, %v758
        %v775 = vpack.c.b16 %v761, %v760
        %v776 = vpack.c.b16 %v763, %v762
        %v777 = vpack.c.b16 %v765, %v764
        %v778 = vpack.c.b16 %v767, %v766
        %v779 = vpack.c.b16 %v769, %v768
        %v780 = vpack.c.b16 %v771, %v770
        %v781 = vpack.c.b16 %v773, %v772
        %790 = vmatprep.subr.bf16.mxu0 0
        %791 = vmatpush1.bf16.msra.mxu0 %v781
        %792 = vmatprep.subr.bf16.mxu0 0
        %793 = vmatpush1.bf16.msra.mxu0 %v780
        %794 = vmatprep.subr.bf16.mxu0 0
        %795 = vmatpush1.bf16.msra.mxu0 %v779
        %796 = vmatprep.subr.bf16.mxu0 0
        %797 = vmatpush1.bf16.msra.mxu0 %v778
        %798 = vmatprep.subr.bf16.mxu0 0
        %799 = vmatpush1.bf16.msra.mxu0 %v777
        %800 = vmatprep.subr.bf16.mxu0 0
        %801 = vmatpush1.bf16.msra.mxu0 %v776
        %802 = vmatprep.subr.bf16.mxu0 0
        %803 = vmatpush1.bf16.msra.mxu0 %v775
        %804 = vmatprep.subr.bf16.mxu0 0
        %805 = vmatpush1.bf16.msra.mxu0 %v774
        %806 = vmatprep.subr.bf16.mxu0 0
        %807 = vmatpush2.bf16.msra.mxu0 0
        %808 = vmatprep.subr.bf16.mxu0 0
        %809 = vmatpush2.bf16.msra.mxu0 0
        %810 = vmatprep.subr.bf16.mxu0 0
        %811 = vmatpush2.bf16.msra.mxu0 0
        %812 = vmatprep.subr.bf16.mxu0 0
        %813 = vmatpush2.bf16.msra.mxu0 0
        %814 = vmatprep.subr.bf16.mxu0 0
        %815 = vmatpush2.bf16.msra.mxu0 0
        %816 = vmatprep.subr.bf16.mxu0 0
        %817 = vmatpush2.bf16.msra.mxu0 0
        %818 = vmatprep.subr.bf16.mxu0 0
        %819 = vmatpush2.bf16.msra.mxu0 0
        %820 = vmatprep.subr.bf16.mxu0 0
        %821 = vmatpush2.bf16.msra.mxu0 0
        %822 = vmatprep.mubr.bf16.mxu0 0
        %823 = vmatmul.mubr.bf16.gmra.mxu0 %v734
        %v824 = vpop.f32.mrf.mxu0
        %v825 = vadd.f32 %v704, %v824
        %v826 = vpop.f32.mrf.mxu0
        %v827 = vpop.f32.mrf.mxu0
        %v828 = vadd.f32 %v707, %v827
        %v829 = vpop.f32.mrf.mxu0
        %830 = vmatprep.mubr.bf16.mxu0 0
        %831 = vmatmul.mubr.bf16.gmra.mxu0 %v735
        %v832 = vpop.f32.mrf.mxu0
        %v833 = vadd.f32 %v712, %v832
        %v834 = vpop.f32.mrf.mxu0
        %v835 = vpop.f32.mrf.mxu0
        %v836 = vadd.f32 %v715, %v835
        %v837 = vpop.f32.mrf.mxu0
        %838 = vmatprep.mubr.bf16.mxu0 0
        %839 = vmatmul.mubr.bf16.gmra.mxu0 %v736
        %v840 = vpop.f32.mrf.mxu0
        %v841 = vadd.f32 %v720, %v840
        %v842 = vpop.f32.mrf.mxu0
        %v843 = vpop.f32.mrf.mxu0
        %v844 = vadd.f32 %v723, %v843
        %v845 = vpop.f32.mrf.mxu0
        %846 = vmatprep.mubr.bf16.mxu0 0
        %847 = vmatmul.mubr.bf16.gmra.mxu0 %v737
        %v848 = vpop.f32.mrf.mxu0
        %v849 = vadd.f32 %v728, %v848
        %v850 = vpop.f32.mrf.mxu0
        %v851 = vpop.f32.mrf.mxu0
        %v852 = vadd.f32 %v731, %v851
        %v853 = vpop.f32.mrf.mxu0
        %854 = vdwg.mxu0
        %s855 = scalar_lea.vmem [#allocation5], 128
        %v856 = vld [vmem:[%s855] sm:$0xf]
        %v857 = vld [vmem:[%s855 + $0x4] sm:$0xf]
        %v858 = vld [vmem:[%s855 + $0x8] sm:$0xf]
        %v859 = vld [vmem:[%s855 + $0xc] sm:$0xf]
        %v860 = vld [vmem:[%s855 + $0x10] sm:$0xf]
        %v861 = vld [vmem:[%s855 + $0x14] sm:$0xf]
        %v862 = vld [vmem:[%s855 + $0x18] sm:$0xf]
        %v863 = vld [vmem:[%s855 + $0x1c] sm:$0xf]
        %v864 = vld [vmem:[%s855 + $0x20] sm:$0xf]
        %v865 = vld [vmem:[%s855 + $0x24] sm:$0xf]
        %v866 = vld [vmem:[%s855 + $0x28] sm:$0xf]
        %v867 = vld [vmem:[%s855 + $0x2c] sm:$0xf]
        %v868 = vld [vmem:[%s855 + $0x30] sm:$0xf]
        %v869 = vld [vmem:[%s855 + $0x34] sm:$0xf]
        %v870 = vld [vmem:[%s855 + $0x38] sm:$0xf]
        %v871 = vld [vmem:[%s855 + $0x3c] sm:$0xf]
        %vm872 = vcmask 1042432
        %vm873 = vcmask 1046532
        %vm874 = vmor %vm872, %vm873
        %v875 = vrot.slane %v474, 5
        %v876 = vrot.slane %v875, 4
        %v877 = vrot.slane %v475, 5
        %v878 = vsel %vm874, %v876, %v877
        %v879 = vrot.slane %v476, 5
        %v880 = vrot.slane %v879, 4
        %v881 = vrot.slane %v477, 5
        %v882 = vsel %vm874, %v880, %v881
        %v883 = vrot.slane %v478, 5
        %v884 = vrot.slane %v883, 4
        %v885 = vrot.slane %v479, 5
        %v886 = vsel %vm874, %v884, %v885
        %v887 = vrot.slane %v480, 5
        %v888 = vrot.slane %v887, 4
        %v889 = vrot.slane %v481, 5
        %v890 = vsel %vm874, %v888, %v889
        %v891 = vrot.slane %v482, 5
        %v892 = vrot.slane %v891, 4
        %v893 = vrot.slane %v483, 5
        %v894 = vsel %vm874, %v892, %v893
        %v895 = vrot.slane %v484, 5
        %v896 = vrot.slane %v895, 4
        %v897 = vrot.slane %v485, 5
        %v898 = vsel %vm874, %v896, %v897
        %v899 = vrot.slane %v486, 5
        %v900 = vrot.slane %v899, 4
        %v901 = vrot.slane %v487, 5
        %v902 = vsel %vm874, %v900, %v901
        %v903 = vrot.slane %v488, 5
        %v904 = vrot.slane %v903, 4
        %v905 = vrot.slane %v489, 5
        %v906 = vsel %vm874, %v904, %v905
        %v907 = vunpack.c.l.b16 %v878
        %v908 = vunpack.c.l.b16 %v882
        %v909 = vunpack.c.l.b16 %v886
        %v910 = vunpack.c.l.b16 %v890
        %v911 = vunpack.c.l.b16 %v894
        %v912 = vunpack.c.l.b16 %v898
        %v913 = vunpack.c.l.b16 %v902
        %v914 = vunpack.c.l.b16 %v906
        %v915 = vpack.c.b16 %v908, %v907
        %v916 = vpack.c.b16 %v910, %v909
        %v917 = vpack.c.b16 %v912, %v911
        %v918 = vpack.c.b16 %v914, %v913
        %v939 = vunpack.c.l.b16 %v856
        %v940 = vunpack.c.l.b16 %v857
        %v941 = vunpack.c.l.b16 %v858
        %v942 = vunpack.c.l.b16 %v859
        %v943 = vunpack.c.l.b16 %v860
        %v944 = vunpack.c.l.b16 %v861
        %v945 = vunpack.c.l.b16 %v862
        %v946 = vunpack.c.l.b16 %v863
        %v947 = vunpack.c.l.b16 %v864
        %v948 = vunpack.c.l.b16 %v865
        %v949 = vunpack.c.l.b16 %v866
        %v950 = vunpack.c.l.b16 %v867
        %v951 = vunpack.c.l.b16 %v868
        %v952 = vunpack.c.l.b16 %v869
        %v953 = vunpack.c.l.b16 %v870
        %v954 = vunpack.c.l.b16 %v871
        %v955 = vpack.c.b16 %v940, %v939
        %v956 = vpack.c.b16 %v942, %v941
        %v957 = vpack.c.b16 %v944, %v943
        %v958 = vpack.c.b16 %v946, %v945
        %v959 = vpack.c.b16 %v948, %v947
        %v960 = vpack.c.b16 %v950, %v949
        %v961 = vpack.c.b16 %v952, %v951
        %v962 = vpack.c.b16 %v954, %v953
        %971 = vmatprep.subr.bf16.mxu0 0
        %972 = vmatpush1.bf16.msra.mxu0 %v962
        %973 = vmatprep.subr.bf16.mxu0 0
        %974 = vmatpush1.bf16.msra.mxu0 %v961
        %975 = vmatprep.subr.bf16.mxu0 0
        %976 = vmatpush1.bf16.msra.mxu0 %v960
        %977 = vmatprep.subr.bf16.mxu0 0
        %978 = vmatpush1.bf16.msra.mxu0 %v959
        %979 = vmatprep.subr.bf16.mxu0 0
        %980 = vmatpush1.bf16.msra.mxu0 %v958
        %981 = vmatprep.subr.bf16.mxu0 0
        %982 = vmatpush1.bf16.msra.mxu0 %v957
        %983 = vmatprep.subr.bf16.mxu0 0
        %984 = vmatpush1.bf16.msra.mxu0 %v956
        %985 = vmatprep.subr.bf16.mxu0 0
        %986 = vmatpush1.bf16.msra.mxu0 %v955
        %987 = vmatprep.subr.bf16.mxu0 0
        %988 = vmatpush2.bf16.msra.mxu0 0
        %989 = vmatprep.subr.bf16.mxu0 0
        %990 = vmatpush2.bf16.msra.mxu0 0
        %991 = vmatprep.subr.bf16.mxu0 0
        %992 = vmatpush2.bf16.msra.mxu0 0
        %993 = vmatprep.subr.bf16.mxu0 0
        %994 = vmatpush2.bf16.msra.mxu0 0
        %995 = vmatprep.subr.bf16.mxu0 0
        %996 = vmatpush2.bf16.msra.mxu0 0
        %997 = vmatprep.subr.bf16.mxu0 0
        %998 = vmatpush2.bf16.msra.mxu0 0
        %999 = vmatprep.subr.bf16.mxu0 0
        %1000 = vmatpush2.bf16.msra.mxu0 0
        %1001 = vmatprep.subr.bf16.mxu0 0
        %1002 = vmatpush2.bf16.msra.mxu0 0
        %1003 = vmatprep.mubr.bf16.mxu0 0
        %1004 = vmatmul.mubr.bf16.gmra.mxu0 %v915
        %v1005 = vpop.f32.mrf.mxu0
        %v1006 = vadd.f32 0.0, %v1005
        %v1007 = vpop.f32.mrf.mxu0
        %v1008 = vpop.f32.mrf.mxu0
        %v1009 = vadd.f32 0.0, %v1008
        %v1010 = vpop.f32.mrf.mxu0
        %1011 = vmatprep.mubr.bf16.mxu0 0
        %1012 = vmatmul.mubr.bf16.gmra.mxu0 %v916
        %v1013 = vpop.f32.mrf.mxu0
        %v1014 = vadd.f32 0.0, %v1013
        %v1015 = vpop.f32.mrf.mxu0
        %v1016 = vpop.f32.mrf.mxu0
        %v1017 = vadd.f32 0.0, %v1016
        %v1018 = vpop.f32.mrf.mxu0
        %1019 = vmatprep.mubr.bf16.mxu0 0
        %1020 = vmatmul.mubr.bf16.gmra.mxu0 %v917
        %v1021 = vpop.f32.mrf.mxu0
        %v1022 = vadd.f32 0.0, %v1021
        %v1023 = vpop.f32.mrf.mxu0
        %v1024 = vpop.f32.mrf.mxu0
        %v1025 = vadd.f32 0.0, %v1024
        %v1026 = vpop.f32.mrf.mxu0
        %1027 = vmatprep.mubr.bf16.mxu0 0
        %1028 = vmatmul.mubr.bf16.gmra.mxu0 %v918
        %v1029 = vpop.f32.mrf.mxu0
        %v1030 = vadd.f32 0.0, %v1029
        %v1031 = vpop.f32.mrf.mxu0
        %v1032 = vpop.f32.mrf.mxu0
        %v1033 = vadd.f32 0.0, %v1032
        %v1034 = vpop.f32.mrf.mxu0
        %1035 = vdwg.mxu0
        %v1036 = vadd.f32 %v825, %v1006
        %v1037 = vadd.f32 %v828, %v1009
        %v1038 = vadd.f32 %v833, %v1014
        %v1039 = vadd.f32 %v836, %v1017
        %v1040 = vadd.f32 %v841, %v1022
        %v1041 = vadd.f32 %v844, %v1025
        %v1042 = vadd.f32 %v849, %v1030
        %v1043 = vadd.f32 %v852, %v1033
        %s1044 = scalar_lea.vmem [#allocation5], 192
        %v1045 = vld [vmem:[%s1044] sm:$0xf]
        %v1046 = vld [vmem:[%s1044 + $0x4] sm:$0xf]
        %v1047 = vld [vmem:[%s1044 + $0x8] sm:$0xf]
        %v1048 = vld [vmem:[%s1044 + $0xc] sm:$0xf]
        %v1049 = vld [vmem:[%s1044 + $0x10] sm:$0xf]
        %v1050 = vld [vmem:[%s1044 + $0x14] sm:$0xf]
        %v1051 = vld [vmem:[%s1044 + $0x18] sm:$0xf]
        %v1052 = vld [vmem:[%s1044 + $0x1c] sm:$0xf]
        %v1053 = vld [vmem:[%s1044 + $0x20] sm:$0xf]
        %v1054 = vld [vmem:[%s1044 + $0x24] sm:$0xf]
        %v1055 = vld [vmem:[%s1044 + $0x28] sm:$0xf]
        %v1056 = vld [vmem:[%s1044 + $0x2c] sm:$0xf]
        %v1057 = vld [vmem:[%s1044 + $0x30] sm:$0xf]
        %v1058 = vld [vmem:[%s1044 + $0x34] sm:$0xf]
        %v1059 = vld [vmem:[%s1044 + $0x38] sm:$0xf]
        %v1060 = vld [vmem:[%s1044 + $0x3c] sm:$0xf]
        %vm1061 = vsmask.f32 2304
        %vm1062 = vsmask.f32 6416
        %vm1063 = vmor %vm1061, %vm1062
        %v1064 = vrot.slane %v494, 5
        %v1065 = vrot.slane %v497, 6
        %v1066 = vor.u32 %v1064, %v1065
        %v1067 = vrot.slane %v1066, 4
        %v1068 = vshrl.u32 %v475, 16
        %v1070 = vrot.slane %v1068, 5
        %v1071 = vrot.slane %v503, 6
        %v1072 = vor.u32 %v1070, %v1071
        %v1073 = vsel %vm1063, %v1067, %v1072
        %v1074 = vrot.slane %v508, 5
        %v1075 = vrot.slane %v511, 6
        %v1076 = vor.u32 %v1074, %v1075
        %v1077 = vrot.slane %v1076, 4
        %v1078 = vshrl.u32 %v477, 16
        %v1080 = vrot.slane %v1078, 5
        %v1081 = vrot.slane %v517, 6
        %v1082 = vor.u32 %v1080, %v1081
        %v1083 = vsel %vm1063, %v1077, %v1082
        %v1084 = vrot.slane %v522, 5
        %v1085 = vrot.slane %v525, 6
        %v1086 = vor.u32 %v1084, %v1085
        %v1087 = vrot.slane %v1086, 4
        %v1088 = vshrl.u32 %v479, 16
        %v1090 = vrot.slane %v1088, 5
        %v1091 = vrot.slane %v531, 6
        %v1092 = vor.u32 %v1090, %v1091
        %v1093 = vsel %vm1063, %v1087, %v1092
        %v1094 = vrot.slane %v536, 5
        %v1095 = vrot.slane %v539, 6
        %v1096 = vor.u32 %v1094, %v1095
        %v1097 = vrot.slane %v1096, 4
        %v1098 = vshrl.u32 %v481, 16
        %v1100 = vrot.slane %v1098, 5
        %v1101 = vrot.slane %v545, 6
        %v1102 = vor.u32 %v1100, %v1101
        %v1103 = vsel %vm1063, %v1097, %v1102
        %v1104 = vrot.slane %v550, 5
        %v1105 = vrot.slane %v553, 6
        %v1106 = vor.u32 %v1104, %v1105
        %v1107 = vrot.slane %v1106, 4
        %v1108 = vshrl.u32 %v483, 16
        %v1110 = vrot.slane %v1108, 5
        %v1111 = vrot.slane %v559, 6
        %v1112 = vor.u32 %v1110, %v1111
        %v1113 = vsel %vm1063, %v1107, %v1112
        %v1114 = vrot.slane %v564, 5
        %v1115 = vrot.slane %v567, 6
        %v1116 = vor.u32 %v1114, %v1115
        %v1117 = vrot.slane %v1116, 4
        %v1118 = vshrl.u32 %v485, 16
        %v1120 = vrot.slane %v1118, 5
        %v1121 = vrot.slane %v573, 6
        %v1122 = vor.u32 %v1120, %v1121
        %v1123 = vsel %vm1063, %v1117, %v1122
        %v1124 = vrot.slane %v578, 5
        %v1125 = vrot.slane %v581, 6
        %v1126 = vor.u32 %v1124, %v1125
        %v1127 = vrot.slane %v1126, 4
        %v1128 = vshrl.u32 %v487, 16
        %v1130 = vrot.slane %v1128, 5
        %v1131 = vrot.slane %v587, 6
        %v1132 = vor.u32 %v1130, %v1131
        %v1133 = vsel %vm1063, %v1127, %v1132
        %v1134 = vrot.slane %v592, 5
        %v1135 = vrot.slane %v595, 6
        %v1136 = vor.u32 %v1134, %v1135
        %v1137 = vrot.slane %v1136, 4
        %v1138 = vshrl.u32 %v489, 16
        %v1140 = vrot.slane %v1138, 5
        %v1141 = vrot.slane %v601, 6
        %v1142 = vor.u32 %v1140, %v1141
        %v1143 = vsel %vm1063, %v1137, %v1142
        %v1144 = vunpack.c.l.b16 %v1073
        %v1145 = vunpack.c.l.b16 %v1083
        %v1146 = vunpack.c.l.b16 %v1093
        %v1147 = vunpack.c.l.b16 %v1103
        %v1148 = vunpack.c.l.b16 %v1113
        %v1149 = vunpack.c.l.b16 %v1123
        %v1150 = vunpack.c.l.b16 %v1133
        %v1151 = vunpack.c.l.b16 %v1143
        %v1152 = vpack.c.b16 %v1145, %v1144
        %v1153 = vpack.c.b16 %v1147, %v1146
        %v1154 = vpack.c.b16 %v1149, %v1148
        %v1155 = vpack.c.b16 %v1151, %v1150
        %v1176 = vunpack.c.l.b16 %v1045
        %v1177 = vunpack.c.l.b16 %v1046
        %v1178 = vunpack.c.l.b16 %v1047
        %v1179 = vunpack.c.l.b16 %v1048
        %v1180 = vunpack.c.l.b16 %v1049
        %v1181 = vunpack.c.l.b16 %v1050
        %v1182 = vunpack.c.l.b16 %v1051
        %v1183 = vunpack.c.l.b16 %v1052
        %v1184 = vunpack.c.l.b16 %v1053
        %v1185 = vunpack.c.l.b16 %v1054
        %v1186 = vunpack.c.l.b16 %v1055
        %v1187 = vunpack.c.l.b16 %v1056
        %v1188 = vunpack.c.l.b16 %v1057
        %v1189 = vunpack.c.l.b16 %v1058
        %v1190 = vunpack.c.l.b16 %v1059
        %v1191 = vunpack.c.l.b16 %v1060
        %v1192 = vpack.c.b16 %v1177, %v1176
        %v1193 = vpack.c.b16 %v1179, %v1178
        %v1194 = vpack.c.b16 %v1181, %v1180
        %v1195 = vpack.c.b16 %v1183, %v1182
        %v1196 = vpack.c.b16 %v1185, %v1184
        %v1197 = vpack.c.b16 %v1187, %v1186
        %v1198 = vpack.c.b16 %v1189, %v1188
        %v1199 = vpack.c.b16 %v1191, %v1190
        %1208 = vmatprep.subr.bf16.mxu0 0
        %1209 = vmatpush1.bf16.msra.mxu0 %v1199
        %1210 = vmatprep.subr.bf16.mxu0 0
        %1211 = vmatpush1.bf16.msra.mxu0 %v1198
        %1212 = vmatprep.subr.bf16.mxu0 0
        %1213 = vmatpush1.bf16.msra.mxu0 %v1197
        %1214 = vmatprep.subr.bf16.mxu0 0
        %1215 = vmatpush1.bf16.msra.mxu0 %v1196
        %1216 = vmatprep.subr.bf16.mxu0 0
        %1217 = vmatpush1.bf16.msra.mxu0 %v1195
        %1218 = vmatprep.subr.bf16.mxu0 0
        %1219 = vmatpush1.bf16.msra.mxu0 %v1194
        %1220 = vmatprep.subr.bf16.mxu0 0
        %1221 = vmatpush1.bf16.msra.mxu0 %v1193
        %1222 = vmatprep.subr.bf16.mxu0 0
        %1223 = vmatpush1.bf16.msra.mxu0 %v1192
        %1224 = vmatprep.subr.bf16.mxu0 0
        %1225 = vmatpush2.bf16.msra.mxu0 0
        %1226 = vmatprep.subr.bf16.mxu0 0
        %1227 = vmatpush2.bf16.msra.mxu0 0
        %1228 = vmatprep.subr.bf16.mxu0 0
        %1229 = vmatpush2.bf16.msra.mxu0 0
        %1230 = vmatprep.subr.bf16.mxu0 0
        %1231 = vmatpush2.bf16.msra.mxu0 0
        %1232 = vmatprep.subr.bf16.mxu0 0
        %1233 = vmatpush2.bf16.msra.mxu0 0
        %1234 = vmatprep.subr.bf16.mxu0 0
        %1235 = vmatpush2.bf16.msra.mxu0 0
        %1236 = vmatprep.subr.bf16.mxu0 0
        %1237 = vmatpush2.bf16.msra.mxu0 0
        %1238 = vmatprep.subr.bf16.mxu0 0
        %1239 = vmatpush2.bf16.msra.mxu0 0
        %1240 = vmatprep.mubr.bf16.mxu0 0
        %1241 = vmatmul.mubr.bf16.gmra.mxu0 %v1152
        %v1242 = vpop.f32.mrf.mxu0
        %v1243 = vadd.f32 0.0, %v1242
        %v1244 = vpop.f32.mrf.mxu0
        %v1245 = vpop.f32.mrf.mxu0
        %v1246 = vadd.f32 0.0, %v1245
        %v1247 = vpop.f32.mrf.mxu0
        %1248 = vmatprep.mubr.bf16.mxu0 0
        %1249 = vmatmul.mubr.bf16.gmra.mxu0 %v1153
        %v1250 = vpop.f32.mrf.mxu0
        %v1251 = vadd.f32 0.0, %v1250
        %v1252 = vpop.f32.mrf.mxu0
        %v1253 = vpop.f32.mrf.mxu0
        %v1254 = vadd.f32 0.0, %v1253
        %v1255 = vpop.f32.mrf.mxu0
        %1256 = vmatprep.mubr.bf16.mxu0 0
        %1257 = vmatmul.mubr.bf16.gmra.mxu0 %v1154
        %v1258 = vpop.f32.mrf.mxu0
        %v1259 = vadd.f32 0.0, %v1258
        %v1260 = vpop.f32.mrf.mxu0
        %v1261 = vpop.f32.mrf.mxu0
        %v1262 = vadd.f32 0.0, %v1261
        %v1263 = vpop.f32.mrf.mxu0
        %1264 = vmatprep.mubr.bf16.mxu0 0
        %1265 = vmatmul.mubr.bf16.gmra.mxu0 %v1155
        %v1266 = vpop.f32.mrf.mxu0
        %v1267 = vadd.f32 0.0, %v1266
        %v1268 = vpop.f32.mrf.mxu0
        %v1269 = vpop.f32.mrf.mxu0
        %v1270 = vadd.f32 0.0, %v1269
        %v1271 = vpop.f32.mrf.mxu0
        %1272 = vdwg.mxu0
        %v1273 = vadd.f32 %v1036, %v1243
        %v1274 = vadd.f32 %v1037, %v1246
        %v1275 = vadd.f32 %v1038, %v1251
        %v1276 = vadd.f32 %v1039, %v1254
        %v1277 = vadd.f32 %v1040, %v1259
        %v1278 = vadd.f32 %v1041, %v1262
        %v1279 = vadd.f32 %v1042, %v1267
        %v1280 = vadd.f32 %v1043, %v1270
        %s1281 = scalar_lea.vmem [#allocation5], 256
        %v1282 = vld [vmem:[%s1281] sm:$0xf]
        %v1283 = vld [vmem:[%s1281 + $0x4] sm:$0xf]
        %v1284 = vld [vmem:[%s1281 + $0x8] sm:$0xf]
        %v1285 = vld [vmem:[%s1281 + $0xc] sm:$0xf]
        %v1286 = vld [vmem:[%s1281 + $0x10] sm:$0xf]
        %v1287 = vld [vmem:[%s1281 + $0x14] sm:$0xf]
        %v1288 = vld [vmem:[%s1281 + $0x18] sm:$0xf]
        %v1289 = vld [vmem:[%s1281 + $0x1c] sm:$0xf]
        %v1290 = vld [vmem:[%s1281 + $0x20] sm:$0xf]
        %v1291 = vld [vmem:[%s1281 + $0x24] sm:$0xf]
        %v1292 = vld [vmem:[%s1281 + $0x28] sm:$0xf]
        %v1293 = vld [vmem:[%s1281 + $0x2c] sm:$0xf]
        %v1294 = vld [vmem:[%s1281 + $0x30] sm:$0xf]
        %v1295 = vld [vmem:[%s1281 + $0x34] sm:$0xf]
        %v1296 = vld [vmem:[%s1281 + $0x38] sm:$0xf]
        %v1297 = vld [vmem:[%s1281 + $0x3c] sm:$0xf]
        %vm1298 = vcmask 1041408
        %vm1299 = vcmask 1045508
        %vm1300 = vmor %vm1298, %vm1299
        %v1301 = vrot.slane %v474, 6
        %v1302 = vrot.slane %v1301, 4
        %v1303 = vrot.slane %v475, 6
        %v1304 = vsel %vm1300, %v1302, %v1303
        %v1305 = vrot.slane %v476, 6
        %v1306 = vrot.slane %v1305, 4
        %v1307 = vrot.slane %v477, 6
        %v1308 = vsel %vm1300, %v1306, %v1307
        %v1309 = vrot.slane %v478, 6
        %v1310 = vrot.slane %v1309, 4
        %v1311 = vrot.slane %v479, 6
        %v1312 = vsel %vm1300, %v1310, %v1311
        %v1313 = vrot.slane %v480, 6
        %v1314 = vrot.slane %v1313, 4
        %v1315 = vrot.slane %v481, 6
        %v1316 = vsel %vm1300, %v1314, %v1315
        %v1317 = vrot.slane %v482, 6
        %v1318 = vrot.slane %v1317, 4
        %v1319 = vrot.slane %v483, 6
        %v1320 = vsel %vm1300, %v1318, %v1319
        %v1321 = vrot.slane %v484, 6
        %v1322 = vrot.slane %v1321, 4
        %v1323 = vrot.slane %v485, 6
        %v1324 = vsel %vm1300, %v1322, %v1323
        %v1325 = vrot.slane %v486, 6
        %v1326 = vrot.slane %v1325, 4
        %v1327 = vrot.slane %v487, 6
        %v1328 = vsel %vm1300, %v1326, %v1327
        %v1329 = vrot.slane %v488, 6
        %v1330 = vrot.slane %v1329, 4
        %v1331 = vrot.slane %v489, 6
        %v1332 = vsel %vm1300, %v1330, %v1331
        %v1333 = vunpack.c.l.b16 %v1304
        %v1334 = vunpack.c.l.b16 %v1308
        %v1335 = vunpack.c.l.b16 %v1312
        %v1336 = vunpack.c.l.b16 %v1316
        %v1337 = vunpack.c.l.b16 %v1320
        %v1338 = vunpack.c.l.b16 %v1324
        %v1339 = vunpack.c.l.b16 %v1328
        %v1340 = vunpack.c.l.b16 %v1332
        %v1341 = vpack.c.b16 %v1334, %v1333
        %v1342 = vpack.c.b16 %v1336, %v1335
        %v1343 = vpack.c.b16 %v1338, %v1337
        %v1344 = vpack.c.b16 %v1340, %v1339
        %v1365 = vunpack.c.l.b16 %v1282
        %v1366 = vunpack.c.l.b16 %v1283
        %v1367 = vunpack.c.l.b16 %v1284
        %v1368 = vunpack.c.l.b16 %v1285
        %v1369 = vunpack.c.l.b16 %v1286
        %v1370 = vunpack.c.l.b16 %v1287
        %v1371 = vunpack.c.l.b16 %v1288
        %v1372 = vunpack.c.l.b16 %v1289
        %v1373 = vunpack.c.l.b16 %v1290
        %v1374 = vunpack.c.l.b16 %v1291
        %v1375 = vunpack.c.l.b16 %v1292
        %v1376 = vunpack.c.l.b16 %v1293
        %v1377 = vunpack.c.l.b16 %v1294
        %v1378 = vunpack.c.l.b16 %v1295
        %v1379 = vunpack.c.l.b16 %v1296
        %v1380 = vunpack.c.l.b16 %v1297
        %v1381 = vpack.c.b16 %v1366, %v1365
        %v1382 = vpack.c.b16 %v1368, %v1367
        %v1383 = vpack.c.b16 %v1370, %v1369
        %v1384 = vpack.c.b16 %v1372, %v1371
        %v1385 = vpack.c.b16 %v1374, %v1373
        %v1386 = vpack.c.b16 %v1376, %v1375
        %v1387 = vpack.c.b16 %v1378, %v1377
        %v1388 = vpack.c.b16 %v1380, %v1379
        %1397 = vmatprep.subr.bf16.mxu0 0
        %1398 = vmatpush1.bf16.msra.mxu0 %v1388
        %1399 = vmatprep.subr.bf16.mxu0 0
        %1400 = vmatpush1.bf16.msra.mxu0 %v1387
        %1401 = vmatprep.subr.bf16.mxu0 0
        %1402 = vmatpush1.bf16.msra.mxu0 %v1386
        %1403 = vmatprep.subr.bf16.mxu0 0
        %1404 = vmatpush1.bf16.msra.mxu0 %v1385
        %1405 = vmatprep.subr.bf16.mxu0 0
        %1406 = vmatpush1.bf16.msra.mxu0 %v1384
        %1407 = vmatprep.subr.bf16.mxu0 0
        %1408 = vmatpush1.bf16.msra.mxu0 %v1383
        %1409 = vmatprep.subr.bf16.mxu0 0
        %1410 = vmatpush1.bf16.msra.mxu0 %v1382
        %1411 = vmatprep.subr.bf16.mxu0 0
        %1412 = vmatpush1.bf16.msra.mxu0 %v1381
        %1413 = vmatprep.subr.bf16.mxu0 0
        %1414 = vmatpush2.bf16.msra.mxu0 0
        %1415 = vmatprep.subr.bf16.mxu0 0
        %1416 = vmatpush2.bf16.msra.mxu0 0
        %1417 = vmatprep.subr.bf16.mxu0 0
        %1418 = vmatpush2.bf16.msra.mxu0 0
        %1419 = vmatprep.subr.bf16.mxu0 0
        %1420 = vmatpush2.bf16.msra.mxu0 0
        %1421 = vmatprep.subr.bf16.mxu0 0
        %1422 = vmatpush2.bf16.msra.mxu0 0
        %1423 = vmatprep.subr.bf16.mxu0 0
        %1424 = vmatpush2.bf16.msra.mxu0 0
        %1425 = vmatprep.subr.bf16.mxu0 0
        %1426 = vmatpush2.bf16.msra.mxu0 0
        %1427 = vmatprep.subr.bf16.mxu0 0
        %1428 = vmatpush2.bf16.msra.mxu0 0
        %1429 = vmatprep.mubr.bf16.mxu0 0
        %1430 = vmatmul.mubr.bf16.gmra.mxu0 %v1341
        %v1431 = vpop.f32.mrf.mxu0
        %v1432 = vadd.f32 0.0, %v1431
        %v1433 = vpop.f32.mrf.mxu0
        %v1434 = vpop.f32.mrf.mxu0
        %v1435 = vadd.f32 0.0, %v1434
        %v1436 = vpop.f32.mrf.mxu0
        %1437 = vmatprep.mubr.bf16.mxu0 0
        %1438 = vmatmul.mubr.bf16.gmra.mxu0 %v1342
        %v1439 = vpop.f32.mrf.mxu0
        %v1440 = vadd.f32 0.0, %v1439
        %v1441 = vpop.f32.mrf.mxu0
        %v1442 = vpop.f32.mrf.mxu0
        %v1443 = vadd.f32 0.0, %v1442
        %v1444 = vpop.f32.mrf.mxu0
        %1445 = vmatprep.mubr.bf16.mxu0 0
        %1446 = vmatmul.mubr.bf16.gmra.mxu0 %v1343
        %v1447 = vpop.f32.mrf.mxu0
        %v1448 = vadd.f32 0.0, %v1447
        %v1449 = vpop.f32.mrf.mxu0
        %v1450 = vpop.f32.mrf.mxu0
        %v1451 = vadd.f32 0.0, %v1450
        %v1452 = vpop.f32.mrf.mxu0
        %1453 = vmatprep.mubr.bf16.mxu0 0
        %1454 = vmatmul.mubr.bf16.gmra.mxu0 %v1344
        %v1455 = vpop.f32.mrf.mxu0
        %v1456 = vadd.f32 0.0, %v1455
        %v1457 = vpop.f32.mrf.mxu0
        %v1458 = vpop.f32.mrf.mxu0
        %v1459 = vadd.f32 0.0, %v1458
        %v1460 = vpop.f32.mrf.mxu0
        %1461 = vdwg.mxu0
        %v1462 = vadd.f32 %v1273, %v1432
        %v1463 = vadd.f32 %v1274, %v1435
        %v1464 = vadd.f32 %v1275, %v1440
        %v1465 = vadd.f32 %v1276, %v1443
        %v1466 = vadd.f32 %v1277, %v1448
        %v1467 = vadd.f32 %v1278, %v1451
        %v1468 = vadd.f32 %v1279, %v1456
        %v1469 = vadd.f32 %v1280, %v1459
        %v1470 = vrot.slane %v1462, 4
        %v1471 = vmax.f32 %v1462, %v1470
        %v1472 = vrot.slane %v1471, 2
        %v1473 = vmax.f32 %v1471, %v1472
        %v1474 = vrot.slane %v1473, 1
        %v1475 = vmax.f32 %v1473, %v1474
        %v1476 = vrot.slane %v1463, 4
        %v1477 = vmax.f32 %v1463, %v1476
        %v1478 = vrot.slane %v1477, 2
        %v1479 = vmax.f32 %v1477, %v1478
        %v1480 = vrot.slane %v1479, 1
        %v1481 = vmax.f32 %v1479, %v1480
        %v1482 = vrot.slane %v1464, 4
        %v1483 = vmax.f32 %v1464, %v1482
        %v1484 = vrot.slane %v1483, 2
        %v1485 = vmax.f32 %v1483, %v1484
        %v1486 = vrot.slane %v1485, 1
        %v1487 = vmax.f32 %v1485, %v1486
        %v1488 = vrot.slane %v1465, 4
        %v1489 = vmax.f32 %v1465, %v1488
        %v1490 = vrot.slane %v1489, 2
        %v1491 = vmax.f32 %v1489, %v1490
        %v1492 = vrot.slane %v1491, 1
        %v1493 = vmax.f32 %v1491, %v1492
        %v1494 = vrot.slane %v1466, 4
        %v1495 = vmax.f32 %v1466, %v1494
        %v1496 = vrot.slane %v1495, 2
        %v1497 = vmax.f32 %v1495, %v1496
        %v1498 = vrot.slane %v1497, 1
        %v1499 = vmax.f32 %v1497, %v1498
        %v1500 = vrot.slane %v1467, 4
        %v1501 = vmax.f32 %v1467, %v1500
        %v1502 = vrot.slane %v1501, 2
        %v1503 = vmax.f32 %v1501, %v1502
        %v1504 = vrot.slane %v1503, 1
        %v1505 = vmax.f32 %v1503, %v1504
        %v1506 = vrot.slane %v1468, 4
        %v1507 = vmax.f32 %v1468, %v1506
        %v1508 = vrot.slane %v1507, 2
        %v1509 = vmax.f32 %v1507, %v1508
        %v1510 = vrot.slane %v1509, 1
        %v1511 = vmax.f32 %v1509, %v1510
        %v1512 = vrot.slane %v1469, 4
        %v1513 = vmax.f32 %v1469, %v1512
        %v1514 = vrot.slane %v1513, 2
        %v1515 = vmax.f32 %v1513, %v1514
        %v1516 = vrot.slane %v1515, 1
        %v1517 = vmax.f32 %v1515, %v1516
        %v1518 = vld [vmem:[%s2] sm:$0x1]
        %v1520 = vlaneseq
        %v1521 = vshrl.u32 %v1520, 7
        %v1522 = vsub.s32 0, %v1521
        %v1523 = vrot.slane %v1518, %v1522
        %v1525 = vadd.f32 %v1475, %v1523
        %v1526 = vadd.f32 %v1481, %v1523
        %v1527 = vadd.f32 %v1487, %v1523
        %v1528 = vadd.f32 %v1493, %v1523
        %v1529 = vadd.f32 %v1499, %v1523
        %v1530 = vadd.f32 %v1505, %v1523
        %v1531 = vadd.f32 %v1511, %v1523
        %v1532 = vadd.f32 %v1517, %v1523
        %v1533 = vmax.f32 %v1525, 0.0
        %v1534 = vmax.f32 %v1526, 0.0
        %v1535 = vmax.f32 %v1527, 0.0
        %v1536 = vmax.f32 %v1528, 0.0
        %v1537 = vmax.f32 %v1529, 0.0
        %v1538 = vmax.f32 %v1530, 0.0
        %v1539 = vmax.f32 %v1531, 0.0
        %v1540 = vmax.f32 %v1532, 0.0
        %v1541 = vld [vmem:[#allocation7] sm:$0xff]
        %v1542 = vld [vmem:[#allocation7 + $0x8] sm:$0xff]
        %v1543 = vld [vmem:[#allocation7 + $0x10] sm:$0xff]
        %v1544 = vld [vmem:[#allocation7 + $0x18] sm:$0xff]
        %v1545 = vld [vmem:[#allocation7 + $0x20] sm:$0xff]
        %v1546 = vld [vmem:[#allocation7 + $0x28] sm:$0xff]
        %v1547 = vld [vmem:[#allocation7 + $0x30] sm:$0xff]
        %v1548 = vld [vmem:[#allocation7 + $0x38] sm:$0xff]
        %v1549 = vld [vmem:[#allocation7 + $0x40] sm:$0xff]
        %v1550 = vld [vmem:[#allocation7 + $0x48] sm:$0xff]
        %v1551 = vld [vmem:[#allocation7 + $0x50] sm:$0xff]
        %v1552 = vld [vmem:[#allocation7 + $0x58] sm:$0xff]
        %v1553 = vld [vmem:[#allocation7 + $0x60] sm:$0xff]
        %v1554 = vld [vmem:[#allocation7 + $0x68] sm:$0xff]
        %v1555 = vld [vmem:[#allocation7 + $0x70] sm:$0xff]
        %v1556 = vld [vmem:[#allocation7 + $0x78] sm:$0xff]
        %v1557 = vld [vmem:[#allocation7 + $0x80] sm:$0xff]
        %v1558 = vld [vmem:[#allocation7 + $0x88] sm:$0xff]
        %v1559 = vld [vmem:[#allocation7 + $0x90] sm:$0xff]
        %v1560 = vld [vmem:[#allocation7 + $0x98] sm:$0xff]
        %v1561 = vld [vmem:[#allocation7 + $0xa0] sm:$0xff]
        %v1562 = vld [vmem:[#allocation7 + $0xa8] sm:$0xff]
        %v1563 = vld [vmem:[#allocation7 + $0xb0] sm:$0xff]
        %v1564 = vld [vmem:[#allocation7 + $0xb8] sm:$0xff]
        %v1565 = vld [vmem:[#allocation7 + $0xc0] sm:$0xff]
        %v1566 = vld [vmem:[#allocation7 + $0xc8] sm:$0xff]
        %v1567 = vld [vmem:[#allocation7 + $0xd0] sm:$0xff]
        %v1568 = vld [vmem:[#allocation7 + $0xd8] sm:$0xff]
        %v1569 = vld [vmem:[#allocation7 + $0xe0] sm:$0xff]
        %v1570 = vld [vmem:[#allocation7 + $0xe8] sm:$0xff]
        %v1571 = vld [vmem:[#allocation7 + $0xf0] sm:$0xff]
        %v1572 = vld [vmem:[#allocation7 + $0xf8] sm:$0xff]
        %v1573 = vld [vmem:[%s4] sm:$0x3]
        %v1575 = vlaneseq
        %v1576 = vshrl.u32 %v1575, 7
        %v1577 = vsub.s32 0, %v1576
        %v1578 = vrot.slane %v1573, %v1577
        %v1579 = vlaneseq
        %v1580 = vshrl.u32 %v1579, 7
        %v1581 = vsub.s32 1, %v1580
        %v1582 = vrot.slane %v1573, %v1581
        %v1593 = vrot.slane %v1534, 7
        %vm1594 = vcmask 1041409
        %v1595 = vsel %vm1594, %v1593, %v1533
        %v1596 = vrot.slane %v1535, 6
        %vm1597 = vcmask 1042434
        %v1598 = vsel %vm1597, %v1596, %v1595
        %v1599 = vrot.slane %v1536, 5
        %vm1600 = vcmask 1043459
        %v1601 = vsel %vm1600, %v1599, %v1598
        %v1602 = vrot.slane %v1537, 4
        %vm1603 = vcmask 1044484
        %v1604 = vsel %vm1603, %v1602, %v1601
        %v1605 = vrot.slane %v1538, 3
        %vm1606 = vcmask 1045509
        %v1607 = vsel %vm1606, %v1605, %v1604
        %v1608 = vrot.slane %v1539, 2
        %vm1609 = vcmask 1046534
        %v1610 = vsel %vm1609, %v1608, %v1607
        %v1611 = vrot.slane %v1540, 1
        %vm1612 = vcmask 1047559
        %v1613 = vsel %vm1612, %v1611, %v1610
        %1615 = vmatprep.subr.mxu0 %v1572
        %1616 = vmatpush1.msra.mxu0 %v1571
        %1617 = vmatprep.subr.mxu0 %v1570
        %1618 = vmatpush1.msra.mxu0 %v1569
        %1619 = vmatprep.subr.mxu0 %v1568
        %1620 = vmatpush1.msra.mxu0 %v1567
        %1621 = vmatprep.subr.mxu0 %v1566
        %1622 = vmatpush1.msra.mxu0 %v1565
        %1623 = vmatprep.subr.mxu0 %v1564
        %1624 = vmatpush1.msra.mxu0 %v1563
        %1625 = vmatprep.subr.mxu0 %v1562
        %1626 = vmatpush1.msra.mxu0 %v1561
        %1627 = vmatprep.subr.mxu0 %v1560
        %1628 = vmatpush1.msra.mxu0 %v1559
        %1629 = vmatprep.subr.mxu0 %v1558
        %1630 = vmatpush1.msra.mxu0 %v1557
        %1631 = vmatprep.subr.mxu0 %v1556
        %1632 = vmatpush1.msra.mxu0 %v1555
        %1633 = vmatprep.subr.mxu0 %v1554
        %1634 = vmatpush1.msra.mxu0 %v1553
        %1635 = vmatprep.subr.mxu0 %v1552
        %1636 = vmatpush1.msra.mxu0 %v1551
        %1637 = vmatprep.subr.mxu0 %v1550
        %1638 = vmatpush1.msra.mxu0 %v1549
        %1639 = vmatprep.subr.mxu0 %v1548
        %1640 = vmatpush1.msra.mxu0 %v1547
        %1641 = vmatprep.subr.mxu0 %v1546
        %1642 = vmatpush1.msra.mxu0 %v1545
        %1643 = vmatprep.subr.mxu0 %v1544
        %1644 = vmatpush1.msra.mxu0 %v1543
        %1645 = vmatprep.subr.mxu0 %v1542
        %1646 = vmatpush1.msra.mxu0 %v1541
        %1647 = vmatprep.subr.mxu0 0.0
        %1648 = vmatpush2.msra.mxu0 0.0
        %1649 = vmatprep.subr.mxu0 0.0
        %1650 = vmatpush2.msra.mxu0 0.0
        %1651 = vmatprep.subr.mxu0 0.0
        %1652 = vmatpush2.msra.mxu0 0.0
        %1653 = vmatprep.subr.mxu0 0.0
        %1654 = vmatpush2.msra.mxu0 0.0
        %1655 = vmatprep.subr.mxu0 0.0
        %1656 = vmatpush2.msra.mxu0 0.0
        %1657 = vmatprep.subr.mxu0 0.0
        %1658 = vmatpush2.msra.mxu0 0.0
        %1659 = vmatprep.subr.mxu0 0.0
        %1660 = vmatpush2.msra.mxu0 0.0
        %1661 = vmatprep.subr.mxu0 0.0
        %1662 = vmatpush2.msra.mxu0 0.0
        %1663 = vmatprep.subr.mxu0 0.0
        %1664 = vmatpush2.msra.mxu0 0.0
        %1665 = vmatprep.subr.mxu0 0.0
        %1666 = vmatpush2.msra.mxu0 0.0
        %1667 = vmatprep.subr.mxu0 0.0
        %1668 = vmatpush2.msra.mxu0 0.0
        %1669 = vmatprep.subr.mxu0 0.0
        %1670 = vmatpush2.msra.mxu0 0.0
        %1671 = vmatprep.subr.mxu0 0.0
        %1672 = vmatpush2.msra.mxu0 0.0
        %1673 = vmatprep.subr.mxu0 0.0
        %1674 = vmatpush2.msra.mxu0 0.0
        %1675 = vmatprep.subr.mxu0 0.0
        %1676 = vmatpush2.msra.mxu0 0.0
        %1677 = vmatprep.subr.mxu0 0.0
        %1678 = vmatpush2.msra.mxu0 0.0
        %1679 = vmatprep.mubr.f32.mxu0 0.0
        %1680 = vmatmul.mubr.f32.gmra.mxu0 %v1613
        %v1681 = vpop.f32.mrf.mxu0
        %v1682 = vadd.f32 %v1578, %v1681
        %v1683 = vpop.f32.mrf.mxu0
        %v1684 = vadd.f32 %v1582, %v1683
        %1685 = vdwg.mxu0
        %v1686 = vmax.f32 %v1682, 0.0
        %v1687 = vxor.u32 %v1684, 2147483648
        %v1688 = vmul.f32 %v1687, 1.442695
        %v1689 = vpow.pop %v1688
        %v1690 = vadd.f32 %v1689, 1.0
        %v1691 = vrcp.pop %v1690
        %v1692 = vmul.f32 1.0, %v1691
        %v1693 = vmul.f32 %v1692, %v1686
        %v1694 = vsub.f32 1.0, %v1692
        %v1695 = vmul.f32 %v1694, %v1613
        %v1696 = vadd.f32 %v1693, %v1695
        %vm1697 = vcmask 261120
        %1698 = vst.msk [vmem:[%s268] sm:$0xff] %vm1697, %v1696
        %s1699 = sand.u32 %s141, 1
        %s1700 = scalar_lea.sflag [#allocation4], %s1699
        %s1701 = sand.u32 %s141, 1
        %s1702 = smul.addr %s1701, 8
        %s1703 = scalar_lea.vmem [#allocation8], %s1702
        // Predicated region
        $region53: #{model_embeddings_forward.1} parent=39 // pred_check
          %p1704 = pneg %p151
        $region54: #{model_embeddings_forward.1} parent=39 // pred_check_branch
          %1706 = sbr.rel (%p1704) target = $region56
        $region55: #{model_embeddings_forward.1} parent=39 // pred_region
          %s1708 = ssub.s32 128, 128
          %1709 = vsyncadd %s1700, %s1708
          %s1710 = smul.addr %s23, 128
          %s1711 = scalar_lea.hbm %s5, %s1710
          %s1713 = sshll.u32 %s1703, 4
          %s1714 = int_to_ptr.vmem [resolvable:$true] %s1713
          %1716 = dma.vmem_to_hbm [thread:$0]  %s1714, 128, %s1711, %s1700
        $region56: #{model_embeddings_forward.1} parent=39 // pred_fallthru
          _
      $region40: #{model_embeddings_forward.1} parent=5 // pred_fallthru
        _
      %p1717 = scmp.le.s32.totalorder 2, %s18
      // Predicated region
      $region57: #{model_embeddings_forward.1} parent=5 // pred_check
        %p1718 = pneg %p1717
      $region58: #{model_embeddings_forward.1} parent=5 // pred_check_branch
        %1720 = sbr.rel (%p1718) target = $region60
      $region59: #{model_embeddings_forward.1} parent=5 // pred_region
        %s1721 = ssub.s32 %s18, 2
        // Predicated region
        $region61: #{model_embeddings_forward.1} parent=59 // pred_check
          %p1722 = pneg %p157
        $region62: #{model_embeddings_forward.1} parent=59 // pred_check_branch
          %1724 = sbr.rel (%p1722) target = $region64
        $region63: #{model_embeddings_forward.1} parent=59 // pred_region
          %s1725 = sand.u32 %s142, 1
          %s1726 = scalar_lea.sflag [#allocation4], %s1725
          %s1727 = sand.u32 %s142, 1
          %s1728 = smul.addr %s1727, 8
          %s1729 = scalar_lea.vmem [#allocation8], %s1728
          %1730 = dma.done %s1726, 128
        $region64: #{model_embeddings_forward.1} parent=59 // pred_fallthru
          _
      $region60: #{model_embeddings_forward.1} parent=5 // pred_fallthru
        _
    $region6: #{model_embeddings_forward.1} parent=1 // loop_footer
      %s22 = sadd.s32 1, %s18
    $region7: #{model_embeddings_forward.1} parent=1 // loop_footer_branch
      %17 = sbr.rel target = $region3
    $region8: #{model_embeddings_forward.1} parent=1 // loop_exit
      _
    %1731 = vsyncpa [#allocation3], 1
    %s1732 = scalar_lea.sflag [#allocation3], 1
    %1733 = vsyncpa %s1732, 1
    %1734 = vsyncpa [#allocation6], 1
    %1735 = vsyncpa [#allocation4], 1
    %s1736 = scalar_lea.sflag [#allocation4], 1
    %1737 = vsyncpa %s1736, 1

</llo_original>
